<compile_context>
chip_gen: v7x
topology: tpu7x:2x2x1
jax: 0.10.0
libtpu: 0.0.40
codegen_flags: <defaults>
</compile_context>

<pallas_src>
import functools

import jax
import jax.numpy as jnp
from jax.experimental import pallas as pl
from jax.experimental.pallas import tpu as pltpu

EPS = 1e-5  # nn.BatchNorm2d default eps

# 3x3 tap order (dh, dw); tap index = (dh+1)*3 + (dw+1)
_TAPS = tuple((dh, dw) for dh in (-1, 0, 1) for dw in (-1, 0, 1))


# ----------------------------- Pallas kernel --------------------------------
def _bn_train(z, g, b):
    """Training-mode BatchNorm over the lane axis (all N*H*W pixels). g, b are (C, 1).
    Applied as a single FMA per element: z*scale + shift."""
    mean = jnp.mean(z, axis=1, keepdims=True)
    var = jnp.mean((z - mean) ** 2, axis=1, keepdims=True)   # biased var (PyTorch training BN)
    scale = g * jax.lax.rsqrt(var + EPS)                     # EUP rsqrt
    shift = b - mean * scale
    return z * scale + shift


def _bottleneck_kernel(x_ref, w3_ref, w2_ref, w1_ref,
                       g3_ref, b3_ref, g2_ref, b2_ref, g1_ref, b1_ref,
                       mask_ref, o_ref, *, spatial_w):
    M = x_ref.shape[1]
    x = x_ref[...]                                            # (Cin, M) fp32; reused as residual

    # ---- stage 1: ConvTranspose 1x1 + BN + ReLU ----
    z1 = jnp.dot(w3_ref[...], x, preferred_element_type=jnp.float32)       # (width, M)
    y1 = jnp.maximum(_bn_train(z1, g3_ref[...], b3_ref[...]), 0.0)

    # ---- stage 2: 3x3 conv (ConvTranspose, stride 1, pad 1) as 9 shifted matmul-accumulates
    #      on the VMEM-resident y1. Shift = flat spatial offset; masks zero the H/W borders
    #      (and prevent cross-image leakage).
    w2_all = w2_ref[...]                                      # (9, width, width)
    mask_all = mask_ref[...]                                  # (9, M)
    acc = None
    for tap, (dh, dw) in enumerate(_TAPS):
        s = dh * spatial_w + dw
        if s == 0:
            shifted = y1                                      # centre tap: no shift, always valid
        else:
            shifted = pltpu.roll(y1, (-s) % M, axis=1)        # shifted[:, m] = y1[:, m + s]
            shifted = shifted * mask_all[tap:tap + 1, :]
        part = jnp.dot(w2_all[tap], shifted, preferred_element_type=jnp.float32)
        acc = part if acc is None else acc + part
    y2 = jnp.maximum(_bn_train(acc, g2_ref[...], b2_ref[...]), 0.0)

    # ---- stage 3: ConvTranspose 1x1 + BN + residual + ReLU ----
    z3 = jnp.dot(w1_ref[...], y2, preferred_element_type=jnp.float32)      # (Cin, M)
    y3 = _bn_train(z3, g1_ref[...], b1_ref[...])
    o_ref[...] = jnp.maximum(y3 + x, 0.0).astype(o_ref.dtype)


# ----------------------------- Bottleneck forward ----------------------------
@jax.jit
def bottleneck_forward(x_nchw, params):
    """Bottleneck.forward with stride=1, output_padding=0, upsample=None,
    groups=1, base_width=64, dilation=1 (default constructor args)."""
    N, Cin, H, W = x_nchw.shape
    width = params["w3"].shape[1]
    M = N * H * W

    # (N, Cin, H, W) -> (Cin, M): flat index m = n*H*W + h*W + w lives on the lane axis.
    x_t = jnp.transpose(x_nchw, (1, 0, 2, 3)).reshape(Cin, M).astype(jnp.float32)

    # ConvTranspose 1x1 == plain matmul; transpose weights for the (C, M) layout.
    w3t = params["w3"][:, :, 0, 0].T                          # (width, Cin)
    w1t = params["w1"][:, :, 0, 0].T                          # (Cin, width)
    # ConvTranspose 3x3 (stride 1, pad 1) == regular conv with weight W2[:, :, 1-dh, 1-dw].
    w2t = jnp.stack([params["w2"][:, :, 1 - dh, 1 - dw].T for dh, dw in _TAPS])  # (9, width, width)

    # Per-tap validity masks over the flattened spatial index (zero padding at borders).
    m_idx = jnp.arange(M, dtype=jnp.int32)
    w_pos = m_idx % W
    h_pos = (m_idx // W) % H
    masks = jnp.stack([
        (((h_pos + dh) >= 0) & ((h_pos + dh) < H) &
         ((w_pos + dw) >= 0) & ((w_pos + dw) < W)).astype(jnp.float32)
        for dh, dw in _TAPS
    ])                                                        # (9, M)

    def col(v):
        return v.reshape(-1, 1).astype(jnp.float32)

    vm = pl.BlockSpec(memory_space=pltpu.MemorySpace.VMEM)
    out_t = pl.pallas_call(
        functools.partial(_bottleneck_kernel, spatial_w=W),
        out_shape=jax.ShapeDtypeStruct((Cin, M), jnp.float32),
        in_specs=[vm] * 11,
        out_specs=vm,
    )(x_t, w3t, w2t, w1t,
      col(params["g3"]), col(params["b3"]),
      col(params["g2"]), col(params["b2"]),
      col(params["g1"]), col(params["b1"]),
      masks)

    return jnp.transpose(out_t.reshape(Cin, N, H, W), (1, 0, 2, 3))   # back to NCHW


# ----------------------------- pure-JAX reference ----------------------------
def _ref_conv_transpose(x, w, padding):
    """Literal ConvTranspose2d (stride=1, dilation=1, output_padding=0, groups=1).
    x: (N,Cin,H,W); w: (Cin,Cout,K,K)."""
    N, Cin, H, W = x.shape
    K = w.shape[2]
    Hf, Wf = H + K - 1, W + K - 1
    y = jnp.zeros((N, w.shape[1], Hf, Wf), jnp.float32)
    for kh in range(K):
        for kw in range(K):
            contrib = jnp.einsum("nihw,io->nohw", x, w[:, :, kh, kw])
            y = y.at[:, :, kh:kh + H, kw:kw + W].add(contrib)
    return y[:, :, padding:Hf - padding, padding:Wf - padding] if padding else y


def _ref_bn_train(x, gamma, beta):
    mean = x.mean(axis=(0, 2, 3), keepdims=True)
    var = x.var(axis=(0, 2, 3), keepdims=True)  # biased, as in PyTorch training BN
    xn = (x - mean) / jnp.sqrt(var + EPS)
    return xn * gamma.reshape(1, -1, 1, 1) + beta.reshape(1, -1, 1, 1)


def bottleneck_reference(x, p):
    out = _ref_conv_transpose(x, p["w3"], padding=0)
    out = jnp.maximum(_ref_bn_train(out, p["g3"], p["b3"]), 0.0)
    out = _ref_conv_transpose(out, p["w2"], padding=1)
    out = jnp.maximum(_ref_bn_train(out, p["g2"], p["b2"]), 0.0)
    out = _ref_conv_transpose(out, p["w1"], padding=0)
    out = _ref_bn_train(out, p["g1"], p["b1"])
    return jnp.maximum(out + x, 0.0)


# ----------------------------- parameter init --------------------------------
def make_params(key, inplanes, planes, base_width=64, groups=1):
    expansion = 4
    width = int(planes * (base_width / 64.0)) * groups
    ks = jax.random.split(key, 9)
    return {
        # ConvTranspose2d weight shape: (in_channels, out_channels/groups, kH, kW)
        "w3": 0.2 * jax.random.normal(ks[0], (planes * expansion, width, 1, 1), jnp.float32),
        "w2": 0.2 * jax.random.normal(ks[1], (width, width, 3, 3), jnp.float32),
        "w1": 0.2 * jax.random.normal(ks[2], (width, inplanes, 1, 1), jnp.float32),
        "g3": 1.0 + 0.1 * jax.random.normal(ks[3], (width,), jnp.float32),
        "b3": 0.1 * jax.random.normal(ks[4], (width,), jnp.float32),
        "g2": 1.0 + 0.1 * jax.random.normal(ks[5], (width,), jnp.float32),
        "b2": 0.1 * jax.random.normal(ks[6], (width,), jnp.float32),
        "g1": 1.0 + 0.1 * jax.random.normal(ks[7], (inplanes,), jnp.float32),
        "b1": 0.1 * jax.random.normal(ks[8], (inplanes,), jnp.float32),
    }


# ----------------------------------- main ------------------------------------
if __name__ == "__main__":
    key = jax.random.PRNGKey(0)
    k_x, k_p = jax.random.split(key)

    # Bottleneck(inplanes=16, planes=4) with defaults -> residual shapes match.
    inplanes, planes = 16, 4
    N, H, W = 2, 16, 16                       # M = N*H*W = 512 (lane-dense, 4 vregs wide)
    x = jax.random.normal(k_x, (N, inplanes, H, W), jnp.float32)   # NCHW input
    params = make_params(k_p, inplanes, planes)

    out = jax.block_until_ready(bottleneck_forward(x, params))
    ref = jax.block_until_ready(bottleneck_reference(x, params))

    assert out.shape == (N, inplanes, H, W)
    err = float(jnp.max(jnp.abs(out - ref)))
    assert jnp.allclose(out, ref, rtol=1e-3, atol=1e-3), err
    print("KERNEL_OK")
</pallas_src>

<mosaic_0001>
module attributes {stable_mosaic.version = 11 : i64} {
  func.func @_bottleneck_kernel(%arg0: memref<16x512xf32, #tpu.memory_space<vmem>>, %arg1: memref<4x16xf32, #tpu.memory_space<vmem>>, %arg2: memref<9x4x4xf32, #tpu.memory_space<vmem>>, %arg3: memref<16x4xf32, #tpu.memory_space<vmem>>, %arg4: memref<4x1xf32, #tpu.memory_space<vmem>>, %arg5: memref<4x1xf32, #tpu.memory_space<vmem>>, %arg6: memref<4x1xf32, #tpu.memory_space<vmem>>, %arg7: memref<4x1xf32, #tpu.memory_space<vmem>>, %arg8: memref<16x1xf32, #tpu.memory_space<vmem>>, %arg9: memref<16x1xf32, #tpu.memory_space<vmem>>, %arg10: memref<9x512xf32, #tpu.memory_space<vmem>>, %arg11: memref<16x512xf32, #tpu.memory_space<vmem>>) attributes {dimension_semantics = [], scalar_prefetch = 0 : i64, scratch_operands = 0 : i64, tpu.core_type = #tpu.core_type<tc>} {
    %c0 = arith.constant 0 : index
    %c0_0 = arith.constant 0 : index
    %0 = vector.load %arg0[%c0, %c0_0] : memref<16x512xf32, #tpu.memory_space<vmem>>, vector<16x512xf32>
    %c0_1 = arith.constant 0 : index
    %c0_2 = arith.constant 0 : index
    %1 = vector.load %arg1[%c0_1, %c0_2] : memref<4x16xf32, #tpu.memory_space<vmem>>, vector<4x16xf32>
    %cst = arith.constant dense<0.000000e+00> : vector<4x512xf32>
    %2 = tpu.matmul %1, %0, %cst {dimension_numbers = #tpu.dot_dimension_numbers<[1], [0], [0], [1], [0, 0, 1, 1], [], []>} : vector<4x16xf32>, vector<16x512xf32>, vector<4x512xf32> -> vector<4x512xf32>
    %c0_3 = arith.constant 0 : index
    %c0_4 = arith.constant 0 : index
    %3 = vector.load %arg4[%c0_3, %c0_4] : memref<4x1xf32, #tpu.memory_space<vmem>>, vector<4x1xf32>
    %c0_5 = arith.constant 0 : index
    %c0_6 = arith.constant 0 : index
    %4 = vector.load %arg5[%c0_5, %c0_6] : memref<4x1xf32, #tpu.memory_space<vmem>>, vector<4x1xf32>
    %cst_7 = arith.constant dense<0.000000e+00> : vector<4xf32>
    %5 = vector.multi_reduction <add>, %2, %cst_7 [1] : vector<4x512xf32> to vector<4xf32>
    %6 = vector.shape_cast %5 : vector<4xf32> to vector<4x1xf32>
    %cst_8 = arith.constant 5.120000e+02 : f32
    %7 = vector.broadcast %cst_8 : f32 to vector<4x1xf32>
    %8 = arith.divf %6, %7 : vector<4x1xf32>
    %9 = vector.broadcast %8 : vector<4x1xf32> to vector<4x512xf32>
    %10 = arith.subf %2, %9 : vector<4x512xf32>
    %11 = arith.mulf %10, %10 : vector<4x512xf32>
    %cst_9 = arith.constant dense<0.000000e+00> : vector<4xf32>
    %12 = vector.multi_reduction <add>, %11, %cst_9 [1] : vector<4x512xf32> to vector<4xf32>
    %13 = vector.shape_cast %12 : vector<4xf32> to vector<4x1xf32>
    %cst_10 = arith.constant 5.120000e+02 : f32
    %14 = vector.broadcast %cst_10 : f32 to vector<4x1xf32>
    %15 = arith.divf %13, %14 : vector<4x1xf32>
    %cst_11 = arith.constant 9.99999974E-6 : f32
    %16 = vector.broadcast %cst_11 : f32 to vector<4x1xf32>
    %17 = arith.addf %15, %16 : vector<4x1xf32>
    %18 = math.rsqrt %17 : vector<4x1xf32>
    %19 = arith.mulf %3, %18 : vector<4x1xf32>
    %20 = arith.mulf %8, %19 : vector<4x1xf32>
    %21 = arith.subf %4, %20 : vector<4x1xf32>
    %22 = vector.broadcast %19 : vector<4x1xf32> to vector<4x512xf32>
    %23 = arith.mulf %2, %22 : vector<4x512xf32>
    %24 = vector.broadcast %21 : vector<4x1xf32> to vector<4x512xf32>
    %25 = arith.addf %23, %24 : vector<4x512xf32>
    %cst_12 = arith.constant 0.000000e+00 : f32
    %26 = vector.broadcast %cst_12 : f32 to vector<4x512xf32>
    %27 = arith.maximumf %25, %26 : vector<4x512xf32>
    %c0_13 = arith.constant 0 : index
    %c0_14 = arith.constant 0 : index
    %c0_15 = arith.constant 0 : index
    %28 = vector.load %arg2[%c0_13, %c0_14, %c0_15] : memref<9x4x4xf32, #tpu.memory_space<vmem>>, vector<9x4x4xf32>
    %c0_16 = arith.constant 0 : index
    %c0_17 = arith.constant 0 : index
    %29 = vector.load %arg10[%c0_16, %c0_17] : memref<9x512xf32, #tpu.memory_space<vmem>>, vector<9x512xf32>
    %c17_i32 = arith.constant 17 : i32
    %30 = tpu.dynamic_rotate %27 by %c17_i32 dim 1 : vector<4x512xf32>, i32 -> vector<4x512xf32>
    %31 = vector.extract_strided_slice %29 {offsets = [0, 0], sizes = [1, 512], strides = [1, 1]} : vector<9x512xf32> to vector<1x512xf32>
    %32 = vector.broadcast %31 : vector<1x512xf32> to vector<4x512xf32>
    %33 = arith.mulf %30, %32 : vector<4x512xf32>
    %34 = vector.extract_strided_slice %28 {offsets = [0, 0, 0], sizes = [1, 4, 4], strides = [1, 1, 1]} : vector<9x4x4xf32> to vector<1x4x4xf32>
    %35 = vector.shape_cast %34 : vector<1x4x4xf32> to vector<4x4xf32>
    %cst_18 = arith.constant dense<0.000000e+00> : vector<4x512xf32>
    %36 = tpu.matmul %35, %33, %cst_18 {dimension_numbers = #tpu.dot_dimension_numbers<[1], [0], [0], [1], [0, 0, 1, 1], [], []>} : vector<4x4xf32>, vector<4x512xf32>, vector<4x512xf32> -> vector<4x512xf32>
    %c16_i32 = arith.constant 16 : i32
    %37 = tpu.dynamic_rotate %27 by %c16_i32 dim 1 : vector<4x512xf32>, i32 -> vector<4x512xf32>
    %38 = vector.extract_strided_slice %29 {offsets = [1, 0], sizes = [1, 512], strides = [1, 1]} : vector<9x512xf32> to vector<1x512xf32>
    %39 = vector.broadcast %38 : vector<1x512xf32> to vector<4x512xf32>
    %40 = arith.mulf %37, %39 : vector<4x512xf32>
    %41 = vector.extract_strided_slice %28 {offsets = [1, 0, 0], sizes = [1, 4, 4], strides = [1, 1, 1]} : vector<9x4x4xf32> to vector<1x4x4xf32>
    %42 = vector.shape_cast %41 : vector<1x4x4xf32> to vector<4x4xf32>
    %cst_19 = arith.constant dense<0.000000e+00> : vector<4x512xf32>
    %43 = tpu.matmul %42, %40, %cst_19 {dimension_numbers = #tpu.dot_dimension_numbers<[1], [0], [0], [1], [0, 0, 1, 1], [], []>} : vector<4x4xf32>, vector<4x512xf32>, vector<4x512xf32> -> vector<4x512xf32>
    %44 = arith.addf %36, %43 : vector<4x512xf32>
    %c15_i32 = arith.constant 15 : i32
    %45 = tpu.dynamic_rotate %27 by %c15_i32 dim 1 : vector<4x512xf32>, i32 -> vector<4x512xf32>
    %46 = vector.extract_strided_slice %29 {offsets = [2, 0], sizes = [1, 512], strides = [1, 1]} : vector<9x512xf32> to vector<1x512xf32>
    %47 = vector.broadcast %46 : vector<1x512xf32> to vector<4x512xf32>
    %48 = arith.mulf %45, %47 : vector<4x512xf32>
    %49 = vector.extract_strided_slice %28 {offsets = [2, 0, 0], sizes = [1, 4, 4], strides = [1, 1, 1]} : vector<9x4x4xf32> to vector<1x4x4xf32>
    %50 = vector.shape_cast %49 : vector<1x4x4xf32> to vector<4x4xf32>
    %cst_20 = arith.constant dense<0.000000e+00> : vector<4x512xf32>
    %51 = tpu.matmul %50, %48, %cst_20 {dimension_numbers = #tpu.dot_dimension_numbers<[1], [0], [0], [1], [0, 0, 1, 1], [], []>} : vector<4x4xf32>, vector<4x512xf32>, vector<4x512xf32> -> vector<4x512xf32>
    %52 = arith.addf %44, %51 : vector<4x512xf32>
    %c1_i32 = arith.constant 1 : i32
    %53 = tpu.dynamic_rotate %27 by %c1_i32 dim 1 : vector<4x512xf32>, i32 -> vector<4x512xf32>
    %54 = vector.extract_strided_slice %29 {offsets = [3, 0], sizes = [1, 512], strides = [1, 1]} : vector<9x512xf32> to vector<1x512xf32>
    %55 = vector.broadcast %54 : vector<1x512xf32> to vector<4x512xf32>
    %56 = arith.mulf %53, %55 : vector<4x512xf32>
    %57 = vector.extract_strided_slice %28 {offsets = [3, 0, 0], sizes = [1, 4, 4], strides = [1, 1, 1]} : vector<9x4x4xf32> to vector<1x4x4xf32>
    %58 = vector.shape_cast %57 : vector<1x4x4xf32> to vector<4x4xf32>
    %cst_21 = arith.constant dense<0.000000e+00> : vector<4x512xf32>
    %59 = tpu.matmul %58, %56, %cst_21 {dimension_numbers = #tpu.dot_dimension_numbers<[1], [0], [0], [1], [0, 0, 1, 1], [], []>} : vector<4x4xf32>, vector<4x512xf32>, vector<4x512xf32> -> vector<4x512xf32>
    %60 = arith.addf %52, %59 : vector<4x512xf32>
    %61 = vector.extract_strided_slice %28 {offsets = [4, 0, 0], sizes = [1, 4, 4], strides = [1, 1, 1]} : vector<9x4x4xf32> to vector<1x4x4xf32>
    %62 = vector.shape_cast %61 : vector<1x4x4xf32> to vector<4x4xf32>
    %cst_22 = arith.constant dense<0.000000e+00> : vector<4x512xf32>
    %63 = tpu.matmul %62, %27, %cst_22 {dimension_numbers = #tpu.dot_dimension_numbers<[1], [0], [0], [1], [0, 0, 1, 1], [], []>} : vector<4x4xf32>, vector<4x512xf32>, vector<4x512xf32> -> vector<4x512xf32>
    %64 = arith.addf %60, %63 : vector<4x512xf32>
    %c511_i32 = arith.constant 511 : i32
    %65 = tpu.dynamic_rotate %27 by %c511_i32 dim 1 : vector<4x512xf32>, i32 -> vector<4x512xf32>
    %66 = vector.extract_strided_slice %29 {offsets = [5, 0], sizes = [1, 512], strides = [1, 1]} : vector<9x512xf32> to vector<1x512xf32>
    %67 = vector.broadcast %66 : vector<1x512xf32> to vector<4x512xf32>
    %68 = arith.mulf %65, %67 : vector<4x512xf32>
    %69 = vector.extract_strided_slice %28 {offsets = [5, 0, 0], sizes = [1, 4, 4], strides = [1, 1, 1]} : vector<9x4x4xf32> to vector<1x4x4xf32>
    %70 = vector.shape_cast %69 : vector<1x4x4xf32> to vector<4x4xf32>
    %cst_23 = arith.constant dense<0.000000e+00> : vector<4x512xf32>
    %71 = tpu.matmul %70, %68, %cst_23 {dimension_numbers = #tpu.dot_dimension_numbers<[1], [0], [0], [1], [0, 0, 1, 1], [], []>} : vector<4x4xf32>, vector<4x512xf32>, vector<4x512xf32> -> vector<4x512xf32>
    %72 = arith.addf %64, %71 : vector<4x512xf32>
    %c497_i32 = arith.constant 497 : i32
    %73 = tpu.dynamic_rotate %27 by %c497_i32 dim 1 : vector<4x512xf32>, i32 -> vector<4x512xf32>
    %74 = vector.extract_strided_slice %29 {offsets = [6, 0], sizes = [1, 512], strides = [1, 1]} : vector<9x512xf32> to vector<1x512xf32>
    %75 = vector.broadcast %74 : vector<1x512xf32> to vector<4x512xf32>
    %76 = arith.mulf %73, %75 : vector<4x512xf32>
    %77 = vector.extract_strided_slice %28 {offsets = [6, 0, 0], sizes = [1, 4, 4], strides = [1, 1, 1]} : vector<9x4x4xf32> to vector<1x4x4xf32>
    %78 = vector.shape_cast %77 : vector<1x4x4xf32> to vector<4x4xf32>
    %cst_24 = arith.constant dense<0.000000e+00> : vector<4x512xf32>
    %79 = tpu.matmul %78, %76, %cst_24 {dimension_numbers = #tpu.dot_dimension_numbers<[1], [0], [0], [1], [0, 0, 1, 1], [], []>} : vector<4x4xf32>, vector<4x512xf32>, vector<4x512xf32> -> vector<4x512xf32>
    %80 = arith.addf %72, %79 : vector<4x512xf32>
    %c496_i32 = arith.constant 496 : i32
    %81 = tpu.dynamic_rotate %27 by %c496_i32 dim 1 : vector<4x512xf32>, i32 -> vector<4x512xf32>
    %82 = vector.extract_strided_slice %29 {offsets = [7, 0], sizes = [1, 512], strides = [1, 1]} : vector<9x512xf32> to vector<1x512xf32>
    %83 = vector.broadcast %82 : vector<1x512xf32> to vector<4x512xf32>
    %84 = arith.mulf %81, %83 : vector<4x512xf32>
    %85 = vector.extract_strided_slice %28 {offsets = [7, 0, 0], sizes = [1, 4, 4], strides = [1, 1, 1]} : vector<9x4x4xf32> to vector<1x4x4xf32>
    %86 = vector.shape_cast %85 : vector<1x4x4xf32> to vector<4x4xf32>
    %cst_25 = arith.constant dense<0.000000e+00> : vector<4x512xf32>
    %87 = tpu.matmul %86, %84, %cst_25 {dimension_numbers = #tpu.dot_dimension_numbers<[1], [0], [0], [1], [0, 0, 1, 1], [], []>} : vector<4x4xf32>, vector<4x512xf32>, vector<4x512xf32> -> vector<4x512xf32>
    %88 = arith.addf %80, %87 : vector<4x512xf32>
    %c495_i32 = arith.constant 495 : i32
    %89 = tpu.dynamic_rotate %27 by %c495_i32 dim 1 : vector<4x512xf32>, i32 -> vector<4x512xf32>
    %90 = vector.extract_strided_slice %29 {offsets = [8, 0], sizes = [1, 512], strides = [1, 1]} : vector<9x512xf32> to vector<1x512xf32>
    %91 = vector.broadcast %90 : vector<1x512xf32> to vector<4x512xf32>
    %92 = arith.mulf %89, %91 : vector<4x512xf32>
    %93 = vector.extract_strided_slice %28 {offsets = [8, 0, 0], sizes = [1, 4, 4], strides = [1, 1, 1]} : vector<9x4x4xf32> to vector<1x4x4xf32>
    %94 = vector.shape_cast %93 : vector<1x4x4xf32> to vector<4x4xf32>
    %cst_26 = arith.constant dense<0.000000e+00> : vector<4x512xf32>
    %95 = tpu.matmul %94, %92, %cst_26 {dimension_numbers = #tpu.dot_dimension_numbers<[1], [0], [0], [1], [0, 0, 1, 1], [], []>} : vector<4x4xf32>, vector<4x512xf32>, vector<4x512xf32> -> vector<4x512xf32>
    %96 = arith.addf %88, %95 : vector<4x512xf32>
    %c0_27 = arith.constant 0 : index
    %c0_28 = arith.constant 0 : index
    %97 = vector.load %arg6[%c0_27, %c0_28] : memref<4x1xf32, #tpu.memory_space<vmem>>, vector<4x1xf32>
    %c0_29 = arith.constant 0 : index
    %c0_30 = arith.constant 0 : index
    %98 = vector.load %arg7[%c0_29, %c0_30] : memref<4x1xf32, #tpu.memory_space<vmem>>, vector<4x1xf32>
    %cst_31 = arith.constant dense<0.000000e+00> : vector<4xf32>
    %99 = vector.multi_reduction <add>, %96, %cst_31 [1] : vector<4x512xf32> to vector<4xf32>
    %100 = vector.shape_cast %99 : vector<4xf32> to vector<4x1xf32>
    %cst_32 = arith.constant 5.120000e+02 : f32
    %101 = vector.broadcast %cst_32 : f32 to vector<4x1xf32>
    %102 = arith.divf %100, %101 : vector<4x1xf32>
    %103 = vector.broadcast %102 : vector<4x1xf32> to vector<4x512xf32>
    %104 = arith.subf %96, %103 : vector<4x512xf32>
    %105 = arith.mulf %104, %104 : vector<4x512xf32>
    %cst_33 = arith.constant dense<0.000000e+00> : vector<4xf32>
    %106 = vector.multi_reduction <add>, %105, %cst_33 [1] : vector<4x512xf32> to vector<4xf32>
    %107 = vector.shape_cast %106 : vector<4xf32> to vector<4x1xf32>
    %cst_34 = arith.constant 5.120000e+02 : f32
    %108 = vector.broadcast %cst_34 : f32 to vector<4x1xf32>
    %109 = arith.divf %107, %108 : vector<4x1xf32>
    %cst_35 = arith.constant 9.99999974E-6 : f32
    %110 = vector.broadcast %cst_35 : f32 to vector<4x1xf32>
    %111 = arith.addf %109, %110 : vector<4x1xf32>
    %112 = math.rsqrt %111 : vector<4x1xf32>
    %113 = arith.mulf %97, %112 : vector<4x1xf32>
    %114 = arith.mulf %102, %113 : vector<4x1xf32>
    %115 = arith.subf %98, %114 : vector<4x1xf32>
    %116 = vector.broadcast %113 : vector<4x1xf32> to vector<4x512xf32>
    %117 = arith.mulf %96, %116 : vector<4x512xf32>
    %118 = vector.broadcast %115 : vector<4x1xf32> to vector<4x512xf32>
    %119 = arith.addf %117, %118 : vector<4x512xf32>
    %cst_36 = arith.constant 0.000000e+00 : f32
    %120 = vector.broadcast %cst_36 : f32 to vector<4x512xf32>
    %121 = arith.maximumf %119, %120 : vector<4x512xf32>
    %c0_37 = arith.constant 0 : index
    %c0_38 = arith.constant 0 : index
    %122 = vector.load %arg3[%c0_37, %c0_38] : memref<16x4xf32, #tpu.memory_space<vmem>>, vector<16x4xf32>
    %cst_39 = arith.constant dense<0.000000e+00> : vector<16x512xf32>
    %123 = tpu.matmul %122, %121, %cst_39 {dimension_numbers = #tpu.dot_dimension_numbers<[1], [0], [0], [1], [0, 0, 1, 1], [], []>} : vector<16x4xf32>, vector<4x512xf32>, vector<16x512xf32> -> vector<16x512xf32>
    %c0_40 = arith.constant 0 : index
    %c0_41 = arith.constant 0 : index
    %124 = vector.load %arg8[%c0_40, %c0_41] : memref<16x1xf32, #tpu.memory_space<vmem>>, vector<16x1xf32>
    %c0_42 = arith.constant 0 : index
    %c0_43 = arith.constant 0 : index
    %125 = vector.load %arg9[%c0_42, %c0_43] : memref<16x1xf32, #tpu.memory_space<vmem>>, vector<16x1xf32>
    %cst_44 = arith.constant dense<0.000000e+00> : vector<16xf32>
    %126 = vector.multi_reduction <add>, %123, %cst_44 [1] : vector<16x512xf32> to vector<16xf32>
    %127 = vector.shape_cast %126 : vector<16xf32> to vector<16x1xf32>
    %cst_45 = arith.constant 5.120000e+02 : f32
    %128 = vector.broadcast %cst_45 : f32 to vector<16x1xf32>
    %129 = arith.divf %127, %128 : vector<16x1xf32>
    %130 = vector.broadcast %129 : vector<16x1xf32> to vector<16x512xf32>
    %131 = arith.subf %123, %130 : vector<16x512xf32>
    %132 = arith.mulf %131, %131 : vector<16x512xf32>
    %cst_46 = arith.constant dense<0.000000e+00> : vector<16xf32>
    %133 = vector.multi_reduction <add>, %132, %cst_46 [1] : vector<16x512xf32> to vector<16xf32>
    %134 = vector.shape_cast %133 : vector<16xf32> to vector<16x1xf32>
    %cst_47 = arith.constant 5.120000e+02 : f32
    %135 = vector.broadcast %cst_47 : f32 to vector<16x1xf32>
    %136 = arith.divf %134, %135 : vector<16x1xf32>
    %cst_48 = arith.constant 9.99999974E-6 : f32
    %137 = vector.broadcast %cst_48 : f32 to vector<16x1xf32>
    %138 = arith.addf %136, %137 : vector<16x1xf32>
    %139 = math.rsqrt %138 : vector<16x1xf32>
    %140 = arith.mulf %124, %139 : vector<16x1xf32>
    %141 = arith.mulf %129, %140 : vector<16x1xf32>
    %142 = arith.subf %125, %141 : vector<16x1xf32>
    %143 = vector.broadcast %140 : vector<16x1xf32> to vector<16x512xf32>
    %144 = arith.mulf %123, %143 : vector<16x512xf32>
    %145 = vector.broadcast %142 : vector<16x1xf32> to vector<16x512xf32>
    %146 = arith.addf %144, %145 : vector<16x512xf32>
    %147 = arith.addf %146, %0 : vector<16x512xf32>
    %cst_49 = arith.constant 0.000000e+00 : f32
    %148 = vector.broadcast %cst_49 : f32 to vector<16x512xf32>
    %149 = arith.maximumf %147, %148 : vector<16x512xf32>
    %c0_50 = arith.constant 0 : index
    %c0_51 = arith.constant 0 : index
    %150 = vector.load %arg11[%c0_50, %c0_51] : memref<16x512xf32, #tpu.memory_space<vmem>>, vector<16x512xf32>
    tpu.vector_store %arg11[%c0_50, %c0_51], %149 {strides = array<i32>} : memref<16x512xf32, #tpu.memory_space<vmem>>, vector<16x512xf32>,
    return
  }
}

</mosaic_0001>

<llo_original>
// kernel: bottleneck_forward.1
$region0: #{bottleneck_forward.1}
  #allocation0 [shape = 'u32[]', space=smem, size = 0x4, offset = 0x4, fixed_abs, tag = 'smem constant byte address 0x4 - core index']
  #allocation1 [shape = 'u32[144,128]{1,0:T(1,128)}', space=vmem, size = 0x12000, scoped, tag = 'internal scratch']
  %s0 = inlined_call_operand.vmem [shape: f32[16,512], index: 0, kind: input, shape index: {}]
  %s1 = inlined_call_operand.vmem [shape: f32[4,16], index: 1, kind: input, shape index: {}]
  %s2 = inlined_call_operand.vmem [shape: f32[9,4,4], index: 2, kind: input, shape index: {}]
  %s3 = inlined_call_operand.vmem [shape: f32[16,4], index: 3, kind: input, shape index: {}]
  %s4 = inlined_call_operand.vmem [shape: f32[4,1], index: 4, kind: input, shape index: {}]
  %s5 = inlined_call_operand.vmem [shape: f32[4,1], index: 5, kind: input, shape index: {}]
  %s6 = inlined_call_operand.vmem [shape: f32[4,1], index: 6, kind: input, shape index: {}]
  %s7 = inlined_call_operand.vmem [shape: f32[4,1], index: 7, kind: input, shape index: {}]
  %s8 = inlined_call_operand.vmem [shape: f32[16,1], index: 8, kind: input, shape index: {}]
  %s9 = inlined_call_operand.vmem [shape: f32[16,1], index: 9, kind: input, shape index: {}]
  %s10 = inlined_call_operand.vmem [shape: f32[9,512], index: 10, kind: input, shape index: {}]
  %s11 = inlined_call_operand.vmem [shape: f32[16,512], index: 11, kind: output, shape index: {}]
  %s12 = sld [smem:[#allocation0]]
  $region54: #{bottleneck_forward.1} parent=0
    _
  %s14 = ssub.s32 1, %s12
  %s15 = scalar_select 0, %s14, %s12
  // Predicated region
  $region2: #{bottleneck_forward.1} parent=0 // pred_check
    _
  $region3: #{bottleneck_forward.1} parent=0 // pred_check_branch
    %17 = sbr.rel (0) target = $region5
  $region4: #{bottleneck_forward.1} parent=0 // pred_region
    _
  $region5: #{bottleneck_forward.1} parent=0 // pred_fallthru
    _
  // Predicated region
  $region6: #{bottleneck_forward.1} parent=0 // pred_check
    _
  $region7: #{bottleneck_forward.1} parent=0 // pred_check_branch
    %19 = sbr.rel (0) target = $region9
  $region8: #{bottleneck_forward.1} parent=0 // pred_region
    _
  $region9: #{bottleneck_forward.1} parent=0 // pred_fallthru
    _
  // Predicated region
  $region10: #{bottleneck_forward.1} parent=0 // pred_check
    _
  $region11: #{bottleneck_forward.1} parent=0 // pred_check_branch
    %21 = sbr.rel (0) target = $region13
  $region12: #{bottleneck_forward.1} parent=0 // pred_region
    _
  $region13: #{bottleneck_forward.1} parent=0 // pred_fallthru
    _
  // Predicated region
  $region14: #{bottleneck_forward.1} parent=0 // pred_check
    _
  $region15: #{bottleneck_forward.1} parent=0 // pred_check_branch
    %23 = sbr.rel (0) target = $region17
  $region16: #{bottleneck_forward.1} parent=0 // pred_region
    _
  $region17: #{bottleneck_forward.1} parent=0 // pred_fallthru
    _
  // Predicated region
  $region18: #{bottleneck_forward.1} parent=0 // pred_check
    _
  $region19: #{bottleneck_forward.1} parent=0 // pred_check_branch
    %25 = sbr.rel (0) target = $region21
  $region20: #{bottleneck_forward.1} parent=0 // pred_region
    _
  $region21: #{bottleneck_forward.1} parent=0 // pred_fallthru
    _
  // Predicated region
  $region22: #{bottleneck_forward.1} parent=0 // pred_check
    _
  $region23: #{bottleneck_forward.1} parent=0 // pred_check_branch
    %27 = sbr.rel (0) target = $region25
  $region24: #{bottleneck_forward.1} parent=0 // pred_region
    _
  $region25: #{bottleneck_forward.1} parent=0 // pred_fallthru
    _
  // Predicated region
  $region26: #{bottleneck_forward.1} parent=0 // pred_check
    _
  $region27: #{bottleneck_forward.1} parent=0 // pred_check_branch
    %29 = sbr.rel (0) target = $region29
  $region28: #{bottleneck_forward.1} parent=0 // pred_region
    _
  $region29: #{bottleneck_forward.1} parent=0 // pred_fallthru
    _
  // Predicated region
  $region30: #{bottleneck_forward.1} parent=0 // pred_check
    _
  $region31: #{bottleneck_forward.1} parent=0 // pred_check_branch
    %31 = sbr.rel (0) target = $region33
  $region32: #{bottleneck_forward.1} parent=0 // pred_region
    _
  $region33: #{bottleneck_forward.1} parent=0 // pred_fallthru
    _
  // Predicated region
  $region34: #{bottleneck_forward.1} parent=0 // pred_check
    _
  $region35: #{bottleneck_forward.1} parent=0 // pred_check_branch
    %33 = sbr.rel (0) target = $region37
  $region36: #{bottleneck_forward.1} parent=0 // pred_region
    _
  $region37: #{bottleneck_forward.1} parent=0 // pred_fallthru
    _
  // Predicated region
  $region38: #{bottleneck_forward.1} parent=0 // pred_check
    _
  $region39: #{bottleneck_forward.1} parent=0 // pred_check_branch
    %35 = sbr.rel (0) target = $region41
  $region40: #{bottleneck_forward.1} parent=0 // pred_region
    _
  $region41: #{bottleneck_forward.1} parent=0 // pred_fallthru
    _
  // Predicated region
  $region42: #{bottleneck_forward.1} parent=0 // pred_check
    _
  $region43: #{bottleneck_forward.1} parent=0 // pred_check_branch
    %37 = sbr.rel (0) target = $region45
  $region44: #{bottleneck_forward.1} parent=0 // pred_region
    _
  $region45: #{bottleneck_forward.1} parent=0 // pred_fallthru
    _
  %v38 = vld [vmem:[%s0] sm:$0xff]
  %v39 = vld [vmem:[%s0 + $0x8] sm:$0xff]
  %v40 = vld [vmem:[%s0 + $0x10] sm:$0xff]
  %v41 = vld [vmem:[%s0 + $0x18] sm:$0xff]
  %v42 = vld [vmem:[%s0 + $0x20] sm:$0xff]
  %v43 = vld [vmem:[%s0 + $0x28] sm:$0xff]
  %v44 = vld [vmem:[%s0 + $0x30] sm:$0xff]
  %v45 = vld [vmem:[%s0 + $0x38] sm:$0xff]
  %v46 = vld [vmem:[%s1] sm:$0xf]
  %vm47 = vcmask 130048
  %v49 = vsel %vm47, %v46, 0
  %51 = vmatprep.subr.mxu0 %v39
  %52 = vmatpush1.msra.mxu0 %v38
  %53 = vmatprep.subr.mxu0 %v43
  %54 = vmatpush1.msra.mxu0 %v42
  %55 = vmatprep.subr.mxu0 0.0
  %56 = vmatpush1.msra.mxu0 0.0
  %57 = vmatprep.subr.mxu0 0.0
  %58 = vmatpush1.msra.mxu0 0.0
  %59 = vmatprep.subr.mxu0 0.0
  %60 = vmatpush1.msra.mxu0 0.0
  %61 = vmatprep.subr.mxu0 0.0
  %62 = vmatpush1.msra.mxu0 0.0
  %63 = vmatprep.subr.mxu0 0.0
  %64 = vmatpush1.msra.mxu0 0.0
  %65 = vmatprep.subr.mxu0 0.0
  %66 = vmatpush1.msra.mxu0 0.0
  %67 = vmatprep.subr.mxu0 0.0
  %68 = vmatpush1.msra.mxu0 0.0
  %69 = vmatprep.subr.mxu0 0.0
  %70 = vmatpush1.msra.mxu0 0.0
  %71 = vmatprep.subr.mxu0 0.0
  %72 = vmatpush1.msra.mxu0 0.0
  %73 = vmatprep.subr.mxu0 0.0
  %74 = vmatpush1.msra.mxu0 0.0
  %75 = vmatprep.subr.mxu0 0.0
  %76 = vmatpush1.msra.mxu0 0.0
  %77 = vmatprep.subr.mxu0 0.0
  %78 = vmatpush1.msra.mxu0 0.0
  %79 = vmatprep.subr.mxu0 0.0
  %80 = vmatpush1.msra.mxu0 0.0
  %81 = vmatprep.subr.mxu0 0.0
  %82 = vmatpush1.msra.mxu0 0.0
  %83 = vmatprep.subr.mxu0 0.0
  %84 = vmatpush1.msra.mxu0 0.0
  %85 = vmatprep.subr.mxu0 0.0
  %86 = vmatpush1.msra.mxu0 0.0
  %87 = vmatprep.subr.mxu0 0.0
  %88 = vmatpush1.msra.mxu0 0.0
  %89 = vmatprep.subr.mxu0 0.0
  %90 = vmatpush1.msra.mxu0 0.0
  %91 = vmatprep.subr.mxu0 0.0
  %92 = vmatpush1.msra.mxu0 0.0
  %93 = vmatprep.subr.mxu0 0.0
  %94 = vmatpush1.msra.mxu0 0.0
  %95 = vmatprep.subr.mxu0 0.0
  %96 = vmatpush1.msra.mxu0 0.0
  %97 = vmatprep.subr.mxu0 0.0
  %98 = vmatpush1.msra.mxu0 0.0
  %99 = vmatprep.subr.mxu0 0.0
  %100 = vmatpush1.msra.mxu0 0.0
  %101 = vmatprep.subr.mxu0 0.0
  %102 = vmatpush1.msra.mxu0 0.0
  %103 = vmatprep.subr.mxu0 0.0
  %104 = vmatpush1.msra.mxu0 0.0
  %105 = vmatprep.subr.mxu0 0.0
  %106 = vmatpush1.msra.mxu0 0.0
  %107 = vmatprep.subr.mxu0 0.0
  %108 = vmatpush1.msra.mxu0 0.0
  %109 = vmatprep.subr.mxu0 0.0
  %110 = vmatpush1.msra.mxu0 0.0
  %111 = vmatprep.subr.mxu0 0.0
  %112 = vmatpush1.msra.mxu0 0.0
  %113 = vmatprep.subr.mxu0 0.0
  %114 = vmatpush1.msra.mxu0 0.0
  %115 = vmatprep.mubr.f32.mxu0 0.0
  %116 = vmatmul.mubr.f32.gmra.mrb[0].mxu0 %v49
  %v117 = vpop.f32.mrb[0].mxu0
  %v118 = vadd.f32 0.0, %v117
  %v119 = vpop.f32.mrb[0].mxu0
  %v120 = vadd.f32 0.0, %v119
  %121 = vdwg.mxu0
  %122 = vmatprep.subr.mxu0 %v41
  %123 = vmatpush1.msra.mxu0 %v40
  %124 = vmatprep.subr.mxu0 %v45
  %125 = vmatpush1.msra.mxu0 %v44
  %126 = vmatprep.subr.mxu0 0.0
  %127 = vmatpush1.msra.mxu0 0.0
  %128 = vmatprep.subr.mxu0 0.0
  %129 = vmatpush1.msra.mxu0 0.0
  %130 = vmatprep.subr.mxu0 0.0
  %131 = vmatpush1.msra.mxu0 0.0
  %132 = vmatprep.subr.mxu0 0.0
  %133 = vmatpush1.msra.mxu0 0.0
  %134 = vmatprep.subr.mxu0 0.0
  %135 = vmatpush1.msra.mxu0 0.0
  %136 = vmatprep.subr.mxu0 0.0
  %137 = vmatpush1.msra.mxu0 0.0
  %138 = vmatprep.subr.mxu0 0.0
  %139 = vmatpush1.msra.mxu0 0.0
  %140 = vmatprep.subr.mxu0 0.0
  %141 = vmatpush1.msra.mxu0 0.0
  %142 = vmatprep.subr.mxu0 0.0
  %143 = vmatpush1.msra.mxu0 0.0
  %144 = vmatprep.subr.mxu0 0.0
  %145 = vmatpush1.msra.mxu0 0.0
  %146 = vmatprep.subr.mxu0 0.0
  %147 = vmatpush1.msra.mxu0 0.0
  %148 = vmatprep.subr.mxu0 0.0
  %149 = vmatpush1.msra.mxu0 0.0
  %150 = vmatprep.subr.mxu0 0.0
  %151 = vmatpush1.msra.mxu0 0.0
  %152 = vmatprep.subr.mxu0 0.0
  %153 = vmatpush1.msra.mxu0 0.0
  %154 = vmatprep.subr.mxu0 0.0
  %155 = vmatpush1.msra.mxu0 0.0
  %156 = vmatprep.subr.mxu0 0.0
  %157 = vmatpush1.msra.mxu0 0.0
  %158 = vmatprep.subr.mxu0 0.0
  %159 = vmatpush1.msra.mxu0 0.0
  %160 = vmatprep.subr.mxu0 0.0
  %161 = vmatpush1.msra.mxu0 0.0
  %162 = vmatprep.subr.mxu0 0.0
  %163 = vmatpush1.msra.mxu0 0.0
  %164 = vmatprep.subr.mxu0 0.0
  %165 = vmatpush1.msra.mxu0 0.0
  %166 = vmatprep.subr.mxu0 0.0
  %167 = vmatpush1.msra.mxu0 0.0
  %168 = vmatprep.subr.mxu0 0.0
  %169 = vmatpush1.msra.mxu0 0.0
  %170 = vmatprep.subr.mxu0 0.0
  %171 = vmatpush1.msra.mxu0 0.0
  %172 = vmatprep.subr.mxu0 0.0
  %173 = vmatpush1.msra.mxu0 0.0
  %174 = vmatprep.subr.mxu0 0.0
  %175 = vmatpush1.msra.mxu0 0.0
  %176 = vmatprep.subr.mxu0 0.0
  %177 = vmatpush1.msra.mxu0 0.0
  %178 = vmatprep.subr.mxu0 0.0
  %179 = vmatpush1.msra.mxu0 0.0
  %180 = vmatprep.subr.mxu0 0.0
  %181 = vmatpush1.msra.mxu0 0.0
  %182 = vmatprep.subr.mxu0 0.0
  %183 = vmatpush1.msra.mxu0 0.0
  %184 = vmatprep.subr.mxu0 0.0
  %185 = vmatpush1.msra.mxu0 0.0
  %186 = vmatprep.mubr.f32.mxu0 0.0
  %187 = vmatmul.mubr.f32.gmra.mrb[0].mxu0 %v49
  %v188 = vpop.f32.mrb[0].mxu0
  %v189 = vadd.f32 0.0, %v188
  %v190 = vpop.f32.mrb[0].mxu0
  %v191 = vadd.f32 0.0, %v190
  %192 = vdwg.mxu0
  %v193 = vld [vmem:[%s4] sm:$0xf]
  %v194 = vld [vmem:[%s5] sm:$0xf]
  %vm195 = vcmask 1043456
  %v196 = vsel %vm195, %v118, 0.0
  %v197 = vsel %vm195, %v120, 0.0
  %v198 = vadd.f32 %v196, %v197
  %v199 = vsel %vm195, %v189, 0.0
  %v200 = vadd.f32 %v198, %v199
  %v201 = vsel %vm195, %v191, 0.0
  %v202 = vadd.f32 %v200, %v201
  %203 = vadd.xlane.f32.xlu0 %v202
  %v204 = vpop.xlane.xlu0 %203
  %v205 = vrcp.pop 512.0
  %v206 = vmul.f32 %v204, %v205
  %v207 = vsub.f32 %v118, %v206
  %v208 = vsub.f32 %v120, %v206
  %v209 = vsub.f32 %v189, %v206
  %v210 = vsub.f32 %v191, %v206
  %v211 = vmul.f32 %v207, %v207
  %v212 = vmul.f32 %v208, %v208
  %v213 = vmul.f32 %v209, %v209
  %v214 = vmul.f32 %v210, %v210
  %v215 = vsel %vm195, %v211, 0.0
  %v216 = vsel %vm195, %v212, 0.0
  %v217 = vadd.f32 %v215, %v216
  %v218 = vsel %vm195, %v213, 0.0
  %v219 = vadd.f32 %v217, %v218
  %v220 = vsel %vm195, %v214, 0.0
  %v221 = vadd.f32 %v219, %v220
  %222 = vadd.xlane.f32.xlu0 %v221
  %v223 = vpop.xlane.xlu0 %222
  %v224 = vmul.f32 %v223, %v205
  %v225 = vadd.f32 %v224, 1e-05
  %v226 = vrsqrt.pop %v225
  %v227 = vmul.f32 %v193, %v226
  %v228 = vmul.f32 %v206, %v227
  %v229 = vsub.f32 %v194, %v228
  %231 = vset.pattern.permute.xlu0 0
  %232 = vperm.xlu0 %231, %v227
  %v233 = vpop.permute.xlu0 %232
  %v235 = vmul.f32 %v118, %v233
  %v236 = vmul.f32 %v120, %v233
  %v237 = vmul.f32 %v189, %v233
  %v238 = vmul.f32 %v191, %v233
  %240 = vset.pattern.permute.xlu0 0
  %241 = vperm.xlu0 %240, %v229
  %v242 = vpop.permute.xlu0 %241
  %v244 = vadd.f32 %v235, %v242
  %v245 = vadd.f32 %v236, %v242
  %v246 = vadd.f32 %v237, %v242
  %v247 = vadd.f32 %v238, %v242
  %v248 = vmax.f32 %v244, 0.0
  %v249 = vmax.f32 %v245, 0.0
  %v250 = vmax.f32 %v246, 0.0
  %v251 = vmax.f32 %v247, 0.0
  %v252 = vld [vmem:[%s2] sm:$0xf]
  %v253 = vld [vmem:[%s2 + $0x4] sm:$0xf]
  %v254 = vld [vmem:[%s2 + $0x8] sm:$0xf]
  %v255 = vld [vmem:[%s2 + $0xc] sm:$0xf]
  %v256 = vld [vmem:[%s2 + $0x10] sm:$0xf]
  %v257 = vld [vmem:[%s2 + $0x14] sm:$0xf]
  %v258 = vld [vmem:[%s2 + $0x18] sm:$0xf]
  %v259 = vld [vmem:[%s2 + $0x1c] sm:$0xf]
  %v260 = vld [vmem:[%s2 + $0x20] sm:$0xf]
  %v261 = vld [vmem:[%s10] sm:$0xff]
  %v262 = vld [vmem:[%s10 + $0x8] sm:$0xff]
  %v263 = vld [vmem:[%s10 + $0x10] sm:$0xff]
  %v264 = vld [vmem:[%s10 + $0x18] sm:$0xff]
  %v265 = vld [vmem:[%s10 + $0x20] sm:$0x1]
  %v266 = vld [vmem:[%s10 + $0x28] sm:$0x1]
  %v267 = vld [vmem:[%s10 + $0x30] sm:$0x1]
  %v268 = vld [vmem:[%s10 + $0x38] sm:$0x1]
  %269 = vrot.lane.b32.xlu0 %v248, 17
  %v270 = vpop.permute.xlu0 %269
  %271 = vrot.lane.b32.xlu0 %v249, 17
  %v272 = vpop.permute.xlu0 %271
  %273 = vrot.lane.b32.xlu0 %v250, 17
  %v274 = vpop.permute.xlu0 %273
  %275 = vrot.lane.b32.xlu0 %v251, 17
  %v276 = vpop.permute.xlu0 %275
  %v277 = vlaneseq
  %v278 = vand.u32 %v277, 127
  %vm279 = vcmp.lt.s32.totalorder %v278, 17
  %v280 = vsel %vm279, %v274, %v276
  %v281 = vsel %vm279, %v272, %v274
  %v282 = vsel %vm279, %v270, %v272
  %v283 = vsel %vm279, %v276, %v270
  %v284 = vlaneseq
  %v285 = vshrl.u32 %v284, 7
  %v286 = vsub.s32 0, %v285
  %v287 = vrot.slane %v261, %v286
  %v288 = vlaneseq
  %v289 = vshrl.u32 %v288, 7
  %v290 = vsub.s32 0, %v289
  %v291 = vrot.slane %v262, %v290
  %v292 = vlaneseq
  %v293 = vshrl.u32 %v292, 7
  %v294 = vsub.s32 0, %v293
  %v295 = vrot.slane %v263, %v294
  %v296 = vlaneseq
  %v297 = vshrl.u32 %v296, 7
  %v298 = vsub.s32 0, %v297
  %v299 = vrot.slane %v264, %v298
  %v300 = vmul.f32 %v283, %v287
  %v301 = vmul.f32 %v282, %v291
  %v302 = vmul.f32 %v281, %v295
  %v303 = vmul.f32 %v280, %v299
  %304 = vrot.lane.b32.xlu0 %v248, 16
  %v305 = vpop.permute.xlu0 %304
  %306 = vrot.lane.b32.xlu0 %v249, 16
  %v307 = vpop.permute.xlu0 %306
  %308 = vrot.lane.b32.xlu0 %v250, 16
  %v309 = vpop.permute.xlu0 %308
  %310 = vrot.lane.b32.xlu0 %v251, 16
  %v311 = vpop.permute.xlu0 %310
  %vm312 = vcmp.lt.s32.totalorder %v278, 16
  %v313 = vsel %vm312, %v309, %v311
  %v314 = vsel %vm312, %v307, %v309
  %v315 = vsel %vm312, %v305, %v307
  %v316 = vsel %vm312, %v311, %v305
  %v317 = vlaneseq
  %v318 = vshrl.u32 %v317, 7
  %v319 = vsub.s32 1, %v318
  %v320 = vrot.slane %v261, %v319
  %v321 = vlaneseq
  %v322 = vshrl.u32 %v321, 7
  %v323 = vsub.s32 1, %v322
  %v324 = vrot.slane %v262, %v323
  %v325 = vlaneseq
  %v326 = vshrl.u32 %v325, 7
  %v327 = vsub.s32 1, %v326
  %v328 = vrot.slane %v263, %v327
  %v329 = vlaneseq
  %v330 = vshrl.u32 %v329, 7
  %v331 = vsub.s32 1, %v330
  %v332 = vrot.slane %v264, %v331
  %v333 = vmul.f32 %v316, %v320
  %v334 = vmul.f32 %v315, %v324
  %v335 = vmul.f32 %v314, %v328
  %v336 = vmul.f32 %v313, %v332
  %vm337 = vcmask 31744
  %v339 = vsel %vm337, %v253, 0
  %v342 = vsel %vm195, %v333, 0
  %v345 = vsel %vm195, %v334, 0
  %v348 = vsel %vm195, %v335, 0
  %v351 = vsel %vm195, %v336, 0
  %353 = vmatprep.subr.mxu0 %v345
  %354 = vmatpush1.msra.mxu0 %v342
  %355 = vmatprep.subr.mxu0 0.0
  %356 = vmatpush1.msra.mxu0 0.0
  %357 = vmatprep.subr.mxu0 0.0
  %358 = vmatpush1.msra.mxu0 0.0
  %359 = vmatprep.subr.mxu0 0.0
  %360 = vmatpush1.msra.mxu0 0.0
  %361 = vmatprep.subr.mxu0 0.0
  %362 = vmatpush1.msra.mxu0 0.0
  %363 = vmatprep.subr.mxu0 0.0
  %364 = vmatpush1.msra.mxu0 0.0
  %365 = vmatprep.subr.mxu0 0.0
  %366 = vmatpush1.msra.mxu0 0.0
  %367 = vmatprep.subr.mxu0 0.0
  %368 = vmatpush1.msra.mxu0 0.0
  %369 = vmatprep.subr.mxu0 0.0
  %370 = vmatpush1.msra.mxu0 0.0
  %371 = vmatprep.subr.mxu0 0.0
  %372 = vmatpush1.msra.mxu0 0.0
  %373 = vmatprep.subr.mxu0 0.0
  %374 = vmatpush1.msra.mxu0 0.0
  %375 = vmatprep.subr.mxu0 0.0
  %376 = vmatpush1.msra.mxu0 0.0
  %377 = vmatprep.subr.mxu0 0.0
  %378 = vmatpush1.msra.mxu0 0.0
  %379 = vmatprep.subr.mxu0 0.0
  %380 = vmatpush1.msra.mxu0 0.0
  %381 = vmatprep.subr.mxu0 0.0
  %382 = vmatpush1.msra.mxu0 0.0
  %383 = vmatprep.subr.mxu0 0.0
  %384 = vmatpush1.msra.mxu0 0.0
  %385 = vmatprep.subr.mxu0 0.0
  %386 = vmatpush1.msra.mxu0 0.0
  %387 = vmatprep.subr.mxu0 0.0
  %388 = vmatpush1.msra.mxu0 0.0
  %389 = vmatprep.subr.mxu0 0.0
  %390 = vmatpush1.msra.mxu0 0.0
  %391 = vmatprep.subr.mxu0 0.0
  %392 = vmatpush1.msra.mxu0 0.0
  %393 = vmatprep.subr.mxu0 0.0
  %394 = vmatpush1.msra.mxu0 0.0
  %395 = vmatprep.subr.mxu0 0.0
  %396 = vmatpush1.msra.mxu0 0.0
  %397 = vmatprep.subr.mxu0 0.0
  %398 = vmatpush1.msra.mxu0 0.0
  %399 = vmatprep.subr.mxu0 0.0
  %400 = vmatpush1.msra.mxu0 0.0
  %401 = vmatprep.subr.mxu0 0.0
  %402 = vmatpush1.msra.mxu0 0.0
  %403 = vmatprep.subr.mxu0 0.0
  %404 = vmatpush1.msra.mxu0 0.0
  %405 = vmatprep.subr.mxu0 0.0
  %406 = vmatpush1.msra.mxu0 0.0
  %407 = vmatprep.subr.mxu0 0.0
  %408 = vmatpush1.msra.mxu0 0.0
  %409 = vmatprep.subr.mxu0 0.0
  %410 = vmatpush1.msra.mxu0 0.0
  %411 = vmatprep.subr.mxu0 0.0
  %412 = vmatpush1.msra.mxu0 0.0
  %413 = vmatprep.subr.mxu0 0.0
  %414 = vmatpush1.msra.mxu0 0.0
  %415 = vmatprep.subr.mxu0 0.0
  %416 = vmatpush1.msra.mxu0 0.0
  %417 = vmatprep.mubr.f32.mxu0 0.0
  %418 = vmatmul.mubr.f32.gmra.mrb[0].mxu0 %v339
  %v419 = vpop.f32.mrb[0].mxu0
  %v420 = vadd.f32 0.0, %v419
  %v421 = vpop.f32.mrb[0].mxu0
  %v422 = vadd.f32 0.0, %v421
  %423 = vdwg.mxu0
  %424 = vmatprep.subr.mxu0 %v351
  %425 = vmatpush1.msra.mxu0 %v348
  %426 = vmatprep.subr.mxu0 0.0
  %427 = vmatpush1.msra.mxu0 0.0
  %428 = vmatprep.subr.mxu0 0.0
  %429 = vmatpush1.msra.mxu0 0.0
  %430 = vmatprep.subr.mxu0 0.0
  %431 = vmatpush1.msra.mxu0 0.0
  %432 = vmatprep.subr.mxu0 0.0
  %433 = vmatpush1.msra.mxu0 0.0
  %434 = vmatprep.subr.mxu0 0.0
  %435 = vmatpush1.msra.mxu0 0.0
  %436 = vmatprep.subr.mxu0 0.0
  %437 = vmatpush1.msra.mxu0 0.0
  %438 = vmatprep.subr.mxu0 0.0
  %439 = vmatpush1.msra.mxu0 0.0
  %440 = vmatprep.subr.mxu0 0.0
  %441 = vmatpush1.msra.mxu0 0.0
  %442 = vmatprep.subr.mxu0 0.0
  %443 = vmatpush1.msra.mxu0 0.0
  %444 = vmatprep.subr.mxu0 0.0
  %445 = vmatpush1.msra.mxu0 0.0
  %446 = vmatprep.subr.mxu0 0.0
  %447 = vmatpush1.msra.mxu0 0.0
  %448 = vmatprep.subr.mxu0 0.0
  %449 = vmatpush1.msra.mxu0 0.0
  %450 = vmatprep.subr.mxu0 0.0
  %451 = vmatpush1.msra.mxu0 0.0
  %452 = vmatprep.subr.mxu0 0.0
  %453 = vmatpush1.msra.mxu0 0.0
  %454 = vmatprep.subr.mxu0 0.0
  %455 = vmatpush1.msra.mxu0 0.0
  %456 = vmatprep.subr.mxu0 0.0
  %457 = vmatpush1.msra.mxu0 0.0
  %458 = vmatprep.subr.mxu0 0.0
  %459 = vmatpush1.msra.mxu0 0.0
  %460 = vmatprep.subr.mxu0 0.0
  %461 = vmatpush1.msra.mxu0 0.0
  %462 = vmatprep.subr.mxu0 0.0
  %463 = vmatpush1.msra.mxu0 0.0
  %464 = vmatprep.subr.mxu0 0.0
  %465 = vmatpush1.msra.mxu0 0.0
  %466 = vmatprep.subr.mxu0 0.0
  %467 = vmatpush1.msra.mxu0 0.0
  %468 = vmatprep.subr.mxu0 0.0
  %469 = vmatpush1.msra.mxu0 0.0
  %470 = vmatprep.subr.mxu0 0.0
  %471 = vmatpush1.msra.mxu0 0.0
  %472 = vmatprep.subr.mxu0 0.0
  %473 = vmatpush1.msra.mxu0 0.0
  %474 = vmatprep.subr.mxu0 0.0
  %475 = vmatpush1.msra.mxu0 0.0
  %476 = vmatprep.subr.mxu0 0.0
  %477 = vmatpush1.msra.mxu0 0.0
  %478 = vmatprep.subr.mxu0 0.0
  %479 = vmatpush1.msra.mxu0 0.0
  %480 = vmatprep.subr.mxu0 0.0
  %481 = vmatpush1.msra.mxu0 0.0
  %482 = vmatprep.subr.mxu0 0.0
  %483 = vmatpush1.msra.mxu0 0.0
  %484 = vmatprep.subr.mxu0 0.0
  %485 = vmatpush1.msra.mxu0 0.0
  %486 = vmatprep.subr.mxu0 0.0
  %487 = vmatpush1.msra.mxu0 0.0
  %488 = vmatprep.mubr.f32.mxu0 0.0
  %489 = vmatmul.mubr.f32.gmra.mrb[0].mxu0 %v339
  %v490 = vpop.f32.mrb[0].mxu0
  %v491 = vadd.f32 0.0, %v490
  %v492 = vpop.f32.mrb[0].mxu0
  %v493 = vadd.f32 0.0, %v492
  %494 = vdwg.mxu0
  %v496 = vsel %vm337, %v252, 0
  %v499 = vsel %vm195, %v300, 0
  %v502 = vsel %vm195, %v301, 0
  %v505 = vsel %vm195, %v302, 0
  %v508 = vsel %vm195, %v303, 0
  %510 = vmatprep.subr.mxu0 %v502
  %511 = vmatpush1.msra.mxu0 %v499
  %512 = vmatprep.subr.mxu0 0.0
  %513 = vmatpush1.msra.mxu0 0.0
  %514 = vmatprep.subr.mxu0 0.0
  %515 = vmatpush1.msra.mxu0 0.0
  %516 = vmatprep.subr.mxu0 0.0
  %517 = vmatpush1.msra.mxu0 0.0
  %518 = vmatprep.subr.mxu0 0.0
  %519 = vmatpush1.msra.mxu0 0.0
  %520 = vmatprep.subr.mxu0 0.0
  %521 = vmatpush1.msra.mxu0 0.0
  %522 = vmatprep.subr.mxu0 0.0
  %523 = vmatpush1.msra.mxu0 0.0
  %524 = vmatprep.subr.mxu0 0.0
  %525 = vmatpush1.msra.mxu0 0.0
  %526 = vmatprep.subr.mxu0 0.0
  %527 = vmatpush1.msra.mxu0 0.0
  %528 = vmatprep.subr.mxu0 0.0
  %529 = vmatpush1.msra.mxu0 0.0
  %530 = vmatprep.subr.mxu0 0.0
  %531 = vmatpush1.msra.mxu0 0.0
  %532 = vmatprep.subr.mxu0 0.0
  %533 = vmatpush1.msra.mxu0 0.0
  %534 = vmatprep.subr.mxu0 0.0
  %535 = vmatpush1.msra.mxu0 0.0
  %536 = vmatprep.subr.mxu0 0.0
  %537 = vmatpush1.msra.mxu0 0.0
  %538 = vmatprep.subr.mxu0 0.0
  %539 = vmatpush1.msra.mxu0 0.0
  %540 = vmatprep.subr.mxu0 0.0
  %541 = vmatpush1.msra.mxu0 0.0
  %542 = vmatprep.subr.mxu0 0.0
  %543 = vmatpush1.msra.mxu0 0.0
  %544 = vmatprep.subr.mxu0 0.0
  %545 = vmatpush1.msra.mxu0 0.0
  %546 = vmatprep.subr.mxu0 0.0
  %547 = vmatpush1.msra.mxu0 0.0
  %548 = vmatprep.subr.mxu0 0.0
  %549 = vmatpush1.msra.mxu0 0.0
  %550 = vmatprep.subr.mxu0 0.0
  %551 = vmatpush1.msra.mxu0 0.0
  %552 = vmatprep.subr.mxu0 0.0
  %553 = vmatpush1.msra.mxu0 0.0
  %554 = vmatprep.subr.mxu0 0.0
  %555 = vmatpush1.msra.mxu0 0.0
  %556 = vmatprep.subr.mxu0 0.0
  %557 = vmatpush1.msra.mxu0 0.0
  %558 = vmatprep.subr.mxu0 0.0
  %559 = vmatpush1.msra.mxu0 0.0
  %560 = vmatprep.subr.mxu0 0.0
  %561 = vmatpush1.msra.mxu0 0.0
  %562 = vmatprep.subr.mxu0 0.0
  %563 = vmatpush1.msra.mxu0 0.0
  %564 = vmatprep.subr.mxu0 0.0
  %565 = vmatpush1.msra.mxu0 0.0
  %566 = vmatprep.subr.mxu0 0.0
  %567 = vmatpush1.msra.mxu0 0.0
  %568 = vmatprep.subr.mxu0 0.0
  %569 = vmatpush1.msra.mxu0 0.0
  %570 = vmatprep.subr.mxu0 0.0
  %571 = vmatpush1.msra.mxu0 0.0
  %572 = vmatprep.subr.mxu0 0.0
  %573 = vmatpush1.msra.mxu0 0.0
  %574 = vmatprep.mubr.f32.mxu0 0.0
  %575 = vmatmul.mubr.f32.gmra.mrb[0].mxu0 %v496
  %v576 = vpop.f32.mrb[0].mxu0
  %v577 = vadd.f32 %v420, %v576
  %v578 = vpop.f32.mrb[0].mxu0
  %v579 = vadd.f32 %v422, %v578
  %580 = vdwg.mxu0
  %581 = vmatprep.subr.mxu0 %v508
  %582 = vmatpush1.msra.mxu0 %v505
  %583 = vmatprep.subr.mxu0 0.0
  %584 = vmatpush1.msra.mxu0 0.0
  %585 = vmatprep.subr.mxu0 0.0
  %586 = vmatpush1.msra.mxu0 0.0
  %587 = vmatprep.subr.mxu0 0.0
  %588 = vmatpush1.msra.mxu0 0.0
  %589 = vmatprep.subr.mxu0 0.0
  %590 = vmatpush1.msra.mxu0 0.0
  %591 = vmatprep.subr.mxu0 0.0
  %592 = vmatpush1.msra.mxu0 0.0
  %593 = vmatprep.subr.mxu0 0.0
  %594 = vmatpush1.msra.mxu0 0.0
  %595 = vmatprep.subr.mxu0 0.0
  %596 = vmatpush1.msra.mxu0 0.0
  %597 = vmatprep.subr.mxu0 0.0
  %598 = vmatpush1.msra.mxu0 0.0
  %599 = vmatprep.subr.mxu0 0.0
  %600 = vmatpush1.msra.mxu0 0.0
  %601 = vmatprep.subr.mxu0 0.0
  %602 = vmatpush1.msra.mxu0 0.0
  %603 = vmatprep.subr.mxu0 0.0
  %604 = vmatpush1.msra.mxu0 0.0
  %605 = vmatprep.subr.mxu0 0.0
  %606 = vmatpush1.msra.mxu0 0.0
  %607 = vmatprep.subr.mxu0 0.0
  %608 = vmatpush1.msra.mxu0 0.0
  %609 = vmatprep.subr.mxu0 0.0
  %610 = vmatpush1.msra.mxu0 0.0
  %611 = vmatprep.subr.mxu0 0.0
  %612 = vmatpush1.msra.mxu0 0.0
  %613 = vmatprep.subr.mxu0 0.0
  %614 = vmatpush1.msra.mxu0 0.0
  %615 = vmatprep.subr.mxu0 0.0
  %616 = vmatpush1.msra.mxu0 0.0
  %617 = vmatprep.subr.mxu0 0.0
  %618 = vmatpush1.msra.mxu0 0.0
  %619 = vmatprep.subr.mxu0 0.0
  %620 = vmatpush1.msra.mxu0 0.0
  %621 = vmatprep.subr.mxu0 0.0
  %622 = vmatpush1.msra.mxu0 0.0
  %623 = vmatprep.subr.mxu0 0.0
  %624 = vmatpush1.msra.mxu0 0.0
  %625 = vmatprep.subr.mxu0 0.0
  %626 = vmatpush1.msra.mxu0 0.0
  %627 = vmatprep.subr.mxu0 0.0
  %628 = vmatpush1.msra.mxu0 0.0
  %629 = vmatprep.subr.mxu0 0.0
  %630 = vmatpush1.msra.mxu0 0.0
  %631 = vmatprep.subr.mxu0 0.0
  %632 = vmatpush1.msra.mxu0 0.0
  %633 = vmatprep.subr.mxu0 0.0
  %634 = vmatpush1.msra.mxu0 0.0
  %635 = vmatprep.subr.mxu0 0.0
  %636 = vmatpush1.msra.mxu0 0.0
  %637 = vmatprep.subr.mxu0 0.0
  %638 = vmatpush1.msra.mxu0 0.0
  %639 = vmatprep.subr.mxu0 0.0
  %640 = vmatpush1.msra.mxu0 0.0
  %641 = vmatprep.subr.mxu0 0.0
  %642 = vmatpush1.msra.mxu0 0.0
  %643 = vmatprep.subr.mxu0 0.0
  %644 = vmatpush1.msra.mxu0 0.0
  %645 = vmatprep.mubr.f32.mxu0 0.0
  %646 = vmatmul.mubr.f32.gmra.mrb[0].mxu0 %v496
  %v647 = vpop.f32.mrb[0].mxu0
  %v648 = vadd.f32 %v491, %v647
  %v649 = vpop.f32.mrb[0].mxu0
  %v650 = vadd.f32 %v493, %v649
  %651 = vdwg.mxu0
  %652 = vrot.lane.b32.xlu0 %v248, 15
  %v653 = vpop.permute.xlu0 %652
  %654 = vrot.lane.b32.xlu0 %v249, 15
  %v655 = vpop.permute.xlu0 %654
  %656 = vrot.lane.b32.xlu0 %v250, 15
  %v657 = vpop.permute.xlu0 %656
  %658 = vrot.lane.b32.xlu0 %v251, 15
  %v659 = vpop.permute.xlu0 %658
  %vm660 = vcmp.lt.s32.totalorder %v278, 15
  %v661 = vsel %vm660, %v657, %v659
  %v662 = vsel %vm660, %v655, %v657
  %v663 = vsel %vm660, %v653, %v655
  %v664 = vsel %vm660, %v659, %v653
  %v665 = vlaneseq
  %v666 = vshrl.u32 %v665, 7
  %v667 = vsub.s32 2, %v666
  %v668 = vrot.slane %v261, %v667
  %v669 = vlaneseq
  %v670 = vshrl.u32 %v669, 7
  %v671 = vsub.s32 2, %v670
  %v672 = vrot.slane %v262, %v671
  %v673 = vlaneseq
  %v674 = vshrl.u32 %v673, 7
  %v675 = vsub.s32 2, %v674
  %v676 = vrot.slane %v263, %v675
  %v677 = vlaneseq
  %v678 = vshrl.u32 %v677, 7
  %v679 = vsub.s32 2, %v678
  %v680 = vrot.slane %v264, %v679
  %v681 = vmul.f32 %v664, %v668
  %v682 = vmul.f32 %v663, %v672
  %v683 = vmul.f32 %v662, %v676
  %v684 = vmul.f32 %v661, %v680
  %v686 = vsel %vm337, %v254, 0
  %v689 = vsel %vm195, %v681, 0
  %v692 = vsel %vm195, %v682, 0
  %v695 = vsel %vm195, %v683, 0
  %v698 = vsel %vm195, %v684, 0
  %700 = vmatprep.subr.mxu0 %v692
  %701 = vmatpush1.msra.mxu0 %v689
  %702 = vmatprep.subr.mxu0 0.0
  %703 = vmatpush1.msra.mxu0 0.0
  %704 = vmatprep.subr.mxu0 0.0
  %705 = vmatpush1.msra.mxu0 0.0
  %706 = vmatprep.subr.mxu0 0.0
  %707 = vmatpush1.msra.mxu0 0.0
  %708 = vmatprep.subr.mxu0 0.0
  %709 = vmatpush1.msra.mxu0 0.0
  %710 = vmatprep.subr.mxu0 0.0
  %711 = vmatpush1.msra.mxu0 0.0
  %712 = vmatprep.subr.mxu0 0.0
  %713 = vmatpush1.msra.mxu0 0.0
  %714 = vmatprep.subr.mxu0 0.0
  %715 = vmatpush1.msra.mxu0 0.0
  %716 = vmatprep.subr.mxu0 0.0
  %717 = vmatpush1.msra.mxu0 0.0
  %718 = vmatprep.subr.mxu0 0.0
  %719 = vmatpush1.msra.mxu0 0.0
  %720 = vmatprep.subr.mxu0 0.0
  %721 = vmatpush1.msra.mxu0 0.0
  %722 = vmatprep.subr.mxu0 0.0
  %723 = vmatpush1.msra.mxu0 0.0
  %724 = vmatprep.subr.mxu0 0.0
  %725 = vmatpush1.msra.mxu0 0.0
  %726 = vmatprep.subr.mxu0 0.0
  %727 = vmatpush1.msra.mxu0 0.0
  %728 = vmatprep.subr.mxu0 0.0
  %729 = vmatpush1.msra.mxu0 0.0
  %730 = vmatprep.subr.mxu0 0.0
  %731 = vmatpush1.msra.mxu0 0.0
  %732 = vmatprep.subr.mxu0 0.0
  %733 = vmatpush1.msra.mxu0 0.0
  %734 = vmatprep.subr.mxu0 0.0
  %735 = vmatpush1.msra.mxu0 0.0
  %736 = vmatprep.subr.mxu0 0.0
  %737 = vmatpush1.msra.mxu0 0.0
  %738 = vmatprep.subr.mxu0 0.0
  %739 = vmatpush1.msra.mxu0 0.0
  %740 = vmatprep.subr.mxu0 0.0
  %741 = vmatpush1.msra.mxu0 0.0
  %742 = vmatprep.subr.mxu0 0.0
  %743 = vmatpush1.msra.mxu0 0.0
  %744 = vmatprep.subr.mxu0 0.0
  %745 = vmatpush1.msra.mxu0 0.0
  %746 = vmatprep.subr.mxu0 0.0
  %747 = vmatpush1.msra.mxu0 0.0
  %748 = vmatprep.subr.mxu0 0.0
  %749 = vmatpush1.msra.mxu0 0.0
  %750 = vmatprep.subr.mxu0 0.0
  %751 = vmatpush1.msra.mxu0 0.0
  %752 = vmatprep.subr.mxu0 0.0
  %753 = vmatpush1.msra.mxu0 0.0
  %754 = vmatprep.subr.mxu0 0.0
  %755 = vmatpush1.msra.mxu0 0.0
  %756 = vmatprep.subr.mxu0 0.0
  %757 = vmatpush1.msra.mxu0 0.0
  %758 = vmatprep.subr.mxu0 0.0
  %759 = vmatpush1.msra.mxu0 0.0
  %760 = vmatprep.subr.mxu0 0.0
  %761 = vmatpush1.msra.mxu0 0.0
  %762 = vmatprep.subr.mxu0 0.0
  %763 = vmatpush1.msra.mxu0 0.0
  %764 = vmatprep.mubr.f32.mxu0 0.0
  %765 = vmatmul.mubr.f32.gmra.mrb[0].mxu0 %v686
  %v766 = vpop.f32.mrb[0].mxu0
  %v767 = vadd.f32 0.0, %v766
  %v768 = vpop.f32.mrb[0].mxu0
  %v769 = vadd.f32 0.0, %v768
  %770 = vdwg.mxu0
  %771 = vmatprep.subr.mxu0 %v698
  %772 = vmatpush1.msra.mxu0 %v695
  %773 = vmatprep.subr.mxu0 0.0
  %774 = vmatpush1.msra.mxu0 0.0
  %775 = vmatprep.subr.mxu0 0.0
  %776 = vmatpush1.msra.mxu0 0.0
  %777 = vmatprep.subr.mxu0 0.0
  %778 = vmatpush1.msra.mxu0 0.0
  %779 = vmatprep.subr.mxu0 0.0
  %780 = vmatpush1.msra.mxu0 0.0
  %781 = vmatprep.subr.mxu0 0.0
  %782 = vmatpush1.msra.mxu0 0.0
  %783 = vmatprep.subr.mxu0 0.0
  %784 = vmatpush1.msra.mxu0 0.0
  %785 = vmatprep.subr.mxu0 0.0
  %786 = vmatpush1.msra.mxu0 0.0
  %787 = vmatprep.subr.mxu0 0.0
  %788 = vmatpush1.msra.mxu0 0.0
  %789 = vmatprep.subr.mxu0 0.0
  %790 = vmatpush1.msra.mxu0 0.0
  %791 = vmatprep.subr.mxu0 0.0
  %792 = vmatpush1.msra.mxu0 0.0
  %793 = vmatprep.subr.mxu0 0.0
  %794 = vmatpush1.msra.mxu0 0.0
  %795 = vmatprep.subr.mxu0 0.0
  %796 = vmatpush1.msra.mxu0 0.0
  %797 = vmatprep.subr.mxu0 0.0
  %798 = vmatpush1.msra.mxu0 0.0
  %799 = vmatprep.subr.mxu0 0.0
  %800 = vmatpush1.msra.mxu0 0.0
  %801 = vmatprep.subr.mxu0 0.0
  %802 = vmatpush1.msra.mxu0 0.0
  %803 = vmatprep.subr.mxu0 0.0
  %804 = vmatpush1.msra.mxu0 0.0
  %805 = vmatprep.subr.mxu0 0.0
  %806 = vmatpush1.msra.mxu0 0.0
  %807 = vmatprep.subr.mxu0 0.0
  %808 = vmatpush1.msra.mxu0 0.0
  %809 = vmatprep.subr.mxu0 0.0
  %810 = vmatpush1.msra.mxu0 0.0
  %811 = vmatprep.subr.mxu0 0.0
  %812 = vmatpush1.msra.mxu0 0.0
  %813 = vmatprep.subr.mxu0 0.0
  %814 = vmatpush1.msra.mxu0 0.0
  %815 = vmatprep.subr.mxu0 0.0
  %816 = vmatpush1.msra.mxu0 0.0
  %817 = vmatprep.subr.mxu0 0.0
  %818 = vmatpush1.msra.mxu0 0.0
  %819 = vmatprep.subr.mxu0 0.0
  %820 = vmatpush1.msra.mxu0 0.0
  %821 = vmatprep.subr.mxu0 0.0
  %822 = vmatpush1.msra.mxu0 0.0
  %823 = vmatprep.subr.mxu0 0.0
  %824 = vmatpush1.msra.mxu0 0.0
  %825 = vmatprep.subr.mxu0 0.0
  %826 = vmatpush1.msra.mxu0 0.0
  %827 = vmatprep.subr.mxu0 0.0
  %828 = vmatpush1.msra.mxu0 0.0
  %829 = vmatprep.subr.mxu0 0.0
  %830 = vmatpush1.msra.mxu0 0.0
  %831 = vmatprep.subr.mxu0 0.0
  %832 = vmatpush1.msra.mxu0 0.0
  %833 = vmatprep.subr.mxu0 0.0
  %834 = vmatpush1.msra.mxu0 0.0
  %835 = vmatprep.mubr.f32.mxu0 0.0
  %836 = vmatmul.mubr.f32.gmra.mrb[0].mxu0 %v686
  %v837 = vpop.f32.mrb[0].mxu0
  %v838 = vadd.f32 0.0, %v837
  %v839 = vpop.f32.mrb[0].mxu0
  %v840 = vadd.f32 0.0, %v839
  %841 = vdwg.mxu0
  %v842 = vadd.f32 %v577, %v767
  %v843 = vadd.f32 %v579, %v769
  %v844 = vadd.f32 %v648, %v838
  %v845 = vadd.f32 %v650, %v840
  %846 = vrot.lane.b32.xlu0 %v248, 1
  %v847 = vpop.permute.xlu0 %846
  %848 = vrot.lane.b32.xlu0 %v249, 1
  %v849 = vpop.permute.xlu0 %848
  %850 = vrot.lane.b32.xlu0 %v250, 1
  %v851 = vpop.permute.xlu0 %850
  %852 = vrot.lane.b32.xlu0 %v251, 1
  %v853 = vpop.permute.xlu0 %852
  %vm854 = vcmp.lt.s32.totalorder %v278, 1
  %v855 = vsel %vm854, %v851, %v853
  %v856 = vsel %vm854, %v849, %v851
  %v857 = vsel %vm854, %v847, %v849
  %v858 = vsel %vm854, %v853, %v847
  %v859 = vlaneseq
  %v860 = vshrl.u32 %v859, 7
  %v861 = vsub.s32 3, %v860
  %v862 = vrot.slane %v261, %v861
  %v863 = vlaneseq
  %v864 = vshrl.u32 %v863, 7
  %v865 = vsub.s32 3, %v864
  %v866 = vrot.slane %v262, %v865
  %v867 = vlaneseq
  %v868 = vshrl.u32 %v867, 7
  %v869 = vsub.s32 3, %v868
  %v870 = vrot.slane %v263, %v869
  %v871 = vlaneseq
  %v872 = vshrl.u32 %v871, 7
  %v873 = vsub.s32 3, %v872
  %v874 = vrot.slane %v264, %v873
  %v875 = vmul.f32 %v858, %v862
  %v876 = vmul.f32 %v857, %v866
  %v877 = vmul.f32 %v856, %v870
  %v878 = vmul.f32 %v855, %v874
  %v880 = vsel %vm337, %v255, 0
  %v883 = vsel %vm195, %v875, 0
  %v886 = vsel %vm195, %v876, 0
  %v889 = vsel %vm195, %v877, 0
  %v892 = vsel %vm195, %v878, 0
  %894 = vmatprep.subr.mxu0 %v886
  %895 = vmatpush1.msra.mxu0 %v883
  %896 = vmatprep.subr.mxu0 0.0
  %897 = vmatpush1.msra.mxu0 0.0
  %898 = vmatprep.subr.mxu0 0.0
  %899 = vmatpush1.msra.mxu0 0.0
  %900 = vmatprep.subr.mxu0 0.0
  %901 = vmatpush1.msra.mxu0 0.0
  %902 = vmatprep.subr.mxu0 0.0
  %903 = vmatpush1.msra.mxu0 0.0
  %904 = vmatprep.subr.mxu0 0.0
  %905 = vmatpush1.msra.mxu0 0.0
  %906 = vmatprep.subr.mxu0 0.0
  %907 = vmatpush1.msra.mxu0 0.0
  %908 = vmatprep.subr.mxu0 0.0
  %909 = vmatpush1.msra.mxu0 0.0
  %910 = vmatprep.subr.mxu0 0.0
  %911 = vmatpush1.msra.mxu0 0.0
  %912 = vmatprep.subr.mxu0 0.0
  %913 = vmatpush1.msra.mxu0 0.0
  %914 = vmatprep.subr.mxu0 0.0
  %915 = vmatpush1.msra.mxu0 0.0
  %916 = vmatprep.subr.mxu0 0.0
  %917 = vmatpush1.msra.mxu0 0.0
  %918 = vmatprep.subr.mxu0 0.0
  %919 = vmatpush1.msra.mxu0 0.0
  %920 = vmatprep.subr.mxu0 0.0
  %921 = vmatpush1.msra.mxu0 0.0
  %922 = vmatprep.subr.mxu0 0.0
  %923 = vmatpush1.msra.mxu0 0.0
  %924 = vmatprep.subr.mxu0 0.0
  %925 = vmatpush1.msra.mxu0 0.0
  %926 = vmatprep.subr.mxu0 0.0
  %927 = vmatpush1.msra.mxu0 0.0
  %928 = vmatprep.subr.mxu0 0.0
  %929 = vmatpush1.msra.mxu0 0.0
  %930 = vmatprep.subr.mxu0 0.0
  %931 = vmatpush1.msra.mxu0 0.0
  %932 = vmatprep.subr.mxu0 0.0
  %933 = vmatpush1.msra.mxu0 0.0
  %934 = vmatprep.subr.mxu0 0.0
  %935 = vmatpush1.msra.mxu0 0.0
  %936 = vmatprep.subr.mxu0 0.0
  %937 = vmatpush1.msra.mxu0 0.0
  %938 = vmatprep.subr.mxu0 0.0
  %939 = vmatpush1.msra.mxu0 0.0
  %940 = vmatprep.subr.mxu0 0.0
  %941 = vmatpush1.msra.mxu0 0.0
  %942 = vmatprep.subr.mxu0 0.0
  %943 = vmatpush1.msra.mxu0 0.0
  %944 = vmatprep.subr.mxu0 0.0
  %945 = vmatpush1.msra.mxu0 0.0
  %946 = vmatprep.subr.mxu0 0.0
  %947 = vmatpush1.msra.mxu0 0.0
  %948 = vmatprep.subr.mxu0 0.0
  %949 = vmatpush1.msra.mxu0 0.0
  %950 = vmatprep.subr.mxu0 0.0
  %951 = vmatpush1.msra.mxu0 0.0
  %952 = vmatprep.subr.mxu0 0.0
  %953 = vmatpush1.msra.mxu0 0.0
  %954 = vmatprep.subr.mxu0 0.0
  %955 = vmatpush1.msra.mxu0 0.0
  %956 = vmatprep.subr.mxu0 0.0
  %957 = vmatpush1.msra.mxu0 0.0
  %958 = vmatprep.mubr.f32.mxu0 0.0
  %959 = vmatmul.mubr.f32.gmra.mrb[0].mxu0 %v880
  %v960 = vpop.f32.mrb[0].mxu0
  %v961 = vadd.f32 0.0, %v960
  %v962 = vpop.f32.mrb[0].mxu0
  %v963 = vadd.f32 0.0, %v962
  %964 = vdwg.mxu0
  %965 = vmatprep.subr.mxu0 %v892
  %966 = vmatpush1.msra.mxu0 %v889
  %967 = vmatprep.subr.mxu0 0.0
  %968 = vmatpush1.msra.mxu0 0.0
  %969 = vmatprep.subr.mxu0 0.0
  %970 = vmatpush1.msra.mxu0 0.0
  %971 = vmatprep.subr.mxu0 0.0
  %972 = vmatpush1.msra.mxu0 0.0
  %973 = vmatprep.subr.mxu0 0.0
  %974 = vmatpush1.msra.mxu0 0.0
  %975 = vmatprep.subr.mxu0 0.0
  %976 = vmatpush1.msra.mxu0 0.0
  %977 = vmatprep.subr.mxu0 0.0
  %978 = vmatpush1.msra.mxu0 0.0
  %979 = vmatprep.subr.mxu0 0.0
  %980 = vmatpush1.msra.mxu0 0.0
  %981 = vmatprep.subr.mxu0 0.0
  %982 = vmatpush1.msra.mxu0 0.0
  %983 = vmatprep.subr.mxu0 0.0
  %984 = vmatpush1.msra.mxu0 0.0
  %985 = vmatprep.subr.mxu0 0.0
  %986 = vmatpush1.msra.mxu0 0.0
  %987 = vmatprep.subr.mxu0 0.0
  %988 = vmatpush1.msra.mxu0 0.0
  %989 = vmatprep.subr.mxu0 0.0
  %990 = vmatpush1.msra.mxu0 0.0
  %991 = vmatprep.subr.mxu0 0.0
  %992 = vmatpush1.msra.mxu0 0.0
  %993 = vmatprep.subr.mxu0 0.0
  %994 = vmatpush1.msra.mxu0 0.0
  %995 = vmatprep.subr.mxu0 0.0
  %996 = vmatpush1.msra.mxu0 0.0
  %997 = vmatprep.subr.mxu0 0.0
  %998 = vmatpush1.msra.mxu0 0.0
  %999 = vmatprep.subr.mxu0 0.0
  %1000 = vmatpush1.msra.mxu0 0.0
  %1001 = vmatprep.subr.mxu0 0.0
  %1002 = vmatpush1.msra.mxu0 0.0
  %1003 = vmatprep.subr.mxu0 0.0
  %1004 = vmatpush1.msra.mxu0 0.0
  %1005 = vmatprep.subr.mxu0 0.0
  %1006 = vmatpush1.msra.mxu0 0.0
  %1007 = vmatprep.subr.mxu0 0.0
  %1008 = vmatpush1.msra.mxu0 0.0
  %1009 = vmatprep.subr.mxu0 0.0
  %1010 = vmatpush1.msra.mxu0 0.0
  %1011 = vmatprep.subr.mxu0 0.0
  %1012 = vmatpush1.msra.mxu0 0.0
  %1013 = vmatprep.subr.mxu0 0.0
  %1014 = vmatpush1.msra.mxu0 0.0
  %1015 = vmatprep.subr.mxu0 0.0
  %1016 = vmatpush1.msra.mxu0 0.0
  %1017 = vmatprep.subr.mxu0 0.0
  %1018 = vmatpush1.msra.mxu0 0.0
  %1019 = vmatprep.subr.mxu0 0.0
  %1020 = vmatpush1.msra.mxu0 0.0
  %1021 = vmatprep.subr.mxu0 0.0
  %1022 = vmatpush1.msra.mxu0 0.0
  %1023 = vmatprep.subr.mxu0 0.0
  %1024 = vmatpush1.msra.mxu0 0.0
  %1025 = vmatprep.subr.mxu0 0.0
  %1026 = vmatpush1.msra.mxu0 0.0
  %1027 = vmatprep.subr.mxu0 0.0
  %1028 = vmatpush1.msra.mxu0 0.0
  %1029 = vmatprep.mubr.f32.mxu0 0.0
  %1030 = vmatmul.mubr.f32.gmra.mrb[0].mxu0 %v880
  %v1031 = vpop.f32.mrb[0].mxu0
  %v1032 = vadd.f32 0.0, %v1031
  %v1033 = vpop.f32.mrb[0].mxu0
  %v1034 = vadd.f32 0.0, %v1033
  %1035 = vdwg.mxu0
  %v1036 = vadd.f32 %v842, %v961
  %v1037 = vadd.f32 %v843, %v963
  %v1038 = vadd.f32 %v844, %v1032
  %v1039 = vadd.f32 %v845, %v1034
  %v1041 = vsel %vm337, %v256, 0
  %v1044 = vsel %vm195, %v248, 0
  %v1047 = vsel %vm195, %v249, 0
  %v1050 = vsel %vm195, %v250, 0
  %v1053 = vsel %vm195, %v251, 0
  %1055 = vmatprep.subr.mxu0 %v1047
  %1056 = vmatpush1.msra.mxu0 %v1044
  %1057 = vmatprep.subr.mxu0 0.0
  %1058 = vmatpush1.msra.mxu0 0.0
  %1059 = vmatprep.subr.mxu0 0.0
  %1060 = vmatpush1.msra.mxu0 0.0
  %1061 = vmatprep.subr.mxu0 0.0
  %1062 = vmatpush1.msra.mxu0 0.0
  %1063 = vmatprep.subr.mxu0 0.0
  %1064 = vmatpush1.msra.mxu0 0.0
  %1065 = vmatprep.subr.mxu0 0.0
  %1066 = vmatpush1.msra.mxu0 0.0
  %1067 = vmatprep.subr.mxu0 0.0
  %1068 = vmatpush1.msra.mxu0 0.0
  %1069 = vmatprep.subr.mxu0 0.0
  %1070 = vmatpush1.msra.mxu0 0.0
  %1071 = vmatprep.subr.mxu0 0.0
  %1072 = vmatpush1.msra.mxu0 0.0
  %1073 = vmatprep.subr.mxu0 0.0
  %1074 = vmatpush1.msra.mxu0 0.0
  %1075 = vmatprep.subr.mxu0 0.0
  %1076 = vmatpush1.msra.mxu0 0.0
  %1077 = vmatprep.subr.mxu0 0.0
  %1078 = vmatpush1.msra.mxu0 0.0
  %1079 = vmatprep.subr.mxu0 0.0
  %1080 = vmatpush1.msra.mxu0 0.0
  %1081 = vmatprep.subr.mxu0 0.0
  %1082 = vmatpush1.msra.mxu0 0.0
  %1083 = vmatprep.subr.mxu0 0.0
  %1084 = vmatpush1.msra.mxu0 0.0
  %1085 = vmatprep.subr.mxu0 0.0
  %1086 = vmatpush1.msra.mxu0 0.0
  %1087 = vmatprep.subr.mxu0 0.0
  %1088 = vmatpush1.msra.mxu0 0.0
  %1089 = vmatprep.subr.mxu0 0.0
  %1090 = vmatpush1.msra.mxu0 0.0
  %1091 = vmatprep.subr.mxu0 0.0
  %1092 = vmatpush1.msra.mxu0 0.0
  %1093 = vmatprep.subr.mxu0 0.0
  %1094 = vmatpush1.msra.mxu0 0.0
  %1095 = vmatprep.subr.mxu0 0.0
  %1096 = vmatpush1.msra.mxu0 0.0
  %1097 = vmatprep.subr.mxu0 0.0
  %1098 = vmatpush1.msra.mxu0 0.0
  %1099 = vmatprep.subr.mxu0 0.0
  %1100 = vmatpush1.msra.mxu0 0.0
  %1101 = vmatprep.subr.mxu0 0.0
  %1102 = vmatpush1.msra.mxu0 0.0
  %1103 = vmatprep.subr.mxu0 0.0
  %1104 = vmatpush1.msra.mxu0 0.0
  %1105 = vmatprep.subr.mxu0 0.0
  %1106 = vmatpush1.msra.mxu0 0.0
  %1107 = vmatprep.subr.mxu0 0.0
  %1108 = vmatpush1.msra.mxu0 0.0
  %1109 = vmatprep.subr.mxu0 0.0
  %1110 = vmatpush1.msra.mxu0 0.0
  %1111 = vmatprep.subr.mxu0 0.0
  %1112 = vmatpush1.msra.mxu0 0.0
  %1113 = vmatprep.subr.mxu0 0.0
  %1114 = vmatpush1.msra.mxu0 0.0
  %1115 = vmatprep.subr.mxu0 0.0
  %1116 = vmatpush1.msra.mxu0 0.0
  %1117 = vmatprep.subr.mxu0 0.0
  %1118 = vmatpush1.msra.mxu0 0.0
  %1119 = vmatprep.mubr.f32.mxu0 0.0
  %1120 = vmatmul.mubr.f32.gmra.mrb[0].mxu0 %v1041
  %v1121 = vpop.f32.mrb[0].mxu0
  %v1122 = vadd.f32 0.0, %v1121
  %v1123 = vpop.f32.mrb[0].mxu0
  %v1124 = vadd.f32 0.0, %v1123
  %1125 = vdwg.mxu0
  %1126 = vmatprep.subr.mxu0 %v1053
  %1127 = vmatpush1.msra.mxu0 %v1050
  %1128 = vmatprep.subr.mxu0 0.0
  %1129 = vmatpush1.msra.mxu0 0.0
  %1130 = vmatprep.subr.mxu0 0.0
  %1131 = vmatpush1.msra.mxu0 0.0
  %1132 = vmatprep.subr.mxu0 0.0
  %1133 = vmatpush1.msra.mxu0 0.0
  %1134 = vmatprep.subr.mxu0 0.0
  %1135 = vmatpush1.msra.mxu0 0.0
  %1136 = vmatprep.subr.mxu0 0.0
  %1137 = vmatpush1.msra.mxu0 0.0
  %1138 = vmatprep.subr.mxu0 0.0
  %1139 = vmatpush1.msra.mxu0 0.0
  %1140 = vmatprep.subr.mxu0 0.0
  %1141 = vmatpush1.msra.mxu0 0.0
  %1142 = vmatprep.subr.mxu0 0.0
  %1143 = vmatpush1.msra.mxu0 0.0
  %1144 = vmatprep.subr.mxu0 0.0
  %1145 = vmatpush1.msra.mxu0 0.0
  %1146 = vmatprep.subr.mxu0 0.0
  %1147 = vmatpush1.msra.mxu0 0.0
  %1148 = vmatprep.subr.mxu0 0.0
  %1149 = vmatpush1.msra.mxu0 0.0
  %1150 = vmatprep.subr.mxu0 0.0
  %1151 = vmatpush1.msra.mxu0 0.0
  %1152 = vmatprep.subr.mxu0 0.0
  %1153 = vmatpush1.msra.mxu0 0.0
  %1154 = vmatprep.subr.mxu0 0.0
  %1155 = vmatpush1.msra.mxu0 0.0
  %1156 = vmatprep.subr.mxu0 0.0
  %1157 = vmatpush1.msra.mxu0 0.0
  %1158 = vmatprep.subr.mxu0 0.0
  %1159 = vmatpush1.msra.mxu0 0.0
  %1160 = vmatprep.subr.mxu0 0.0
  %1161 = vmatpush1.msra.mxu0 0.0
  %1162 = vmatprep.subr.mxu0 0.0
  %1163 = vmatpush1.msra.mxu0 0.0
  %1164 = vmatprep.subr.mxu0 0.0
  %1165 = vmatpush1.msra.mxu0 0.0
  %1166 = vmatprep.subr.mxu0 0.0
  %1167 = vmatpush1.msra.mxu0 0.0
  %1168 = vmatprep.subr.mxu0 0.0
  %1169 = vmatpush1.msra.mxu0 0.0
  %1170 = vmatprep.subr.mxu0 0.0
  %1171 = vmatpush1.msra.mxu0 0.0
  %1172 = vmatprep.subr.mxu0 0.0
  %1173 = vmatpush1.msra.mxu0 0.0
  %1174 = vmatprep.subr.mxu0 0.0
  %1175 = vmatpush1.msra.mxu0 0.0
  %1176 = vmatprep.subr.mxu0 0.0
  %1177 = vmatpush1.msra.mxu0 0.0
  %1178 = vmatprep.subr.mxu0 0.0
  %1179 = vmatpush1.msra.mxu0 0.0
  %1180 = vmatprep.subr.mxu0 0.0
  %1181 = vmatpush1.msra.mxu0 0.0
  %1182 = vmatprep.subr.mxu0 0.0
  %1183 = vmatpush1.msra.mxu0 0.0
  %1184 = vmatprep.subr.mxu0 0.0
  %1185 = vmatpush1.msra.mxu0 0.0
  %1186 = vmatprep.subr.mxu0 0.0
  %1187 = vmatpush1.msra.mxu0 0.0
  %1188 = vmatprep.subr.mxu0 0.0
  %1189 = vmatpush1.msra.mxu0 0.0
  %1190 = vmatprep.mubr.f32.mxu0 0.0
  %1191 = vmatmul.mubr.f32.gmra.mrb[0].mxu0 %v1041
  %v1192 = vpop.f32.mrb[0].mxu0
  %v1193 = vadd.f32 0.0, %v1192
  %v1194 = vpop.f32.mrb[0].mxu0
  %v1195 = vadd.f32 0.0, %v1194
  %1196 = vdwg.mxu0
  %v1197 = vadd.f32 %v1036, %v1122
  %v1198 = vadd.f32 %v1037, %v1124
  %v1199 = vadd.f32 %v1038, %v1193
  %v1200 = vadd.f32 %v1039, %v1195
  %1201 = vrot.lane.b32.xlu0 %v248, 127
  %v1202 = vpop.permute.xlu0 %1201
  %1203 = vrot.lane.b32.xlu0 %v249, 127
  %v1204 = vpop.permute.xlu0 %1203
  %1205 = vrot.lane.b32.xlu0 %v250, 127
  %v1206 = vpop.permute.xlu0 %1205
  %1207 = vrot.lane.b32.xlu0 %v251, 127
  %v1208 = vpop.permute.xlu0 %1207
  %vm1209 = vcmp.lt.s32.totalorder %v278, 127
  %v1210 = vsel %vm1209, %v1206, %v1208
  %v1211 = vsel %vm1209, %v1204, %v1206
  %v1212 = vsel %vm1209, %v1202, %v1204
  %v1213 = vsel %vm1209, %v1208, %v1202
  %v1214 = vlaneseq
  %v1215 = vshrl.u32 %v1214, 7
  %v1216 = vsub.s32 5, %v1215
  %v1217 = vrot.slane %v261, %v1216
  %v1218 = vlaneseq
  %v1219 = vshrl.u32 %v1218, 7
  %v1220 = vsub.s32 5, %v1219
  %v1221 = vrot.slane %v262, %v1220
  %v1222 = vlaneseq
  %v1223 = vshrl.u32 %v1222, 7
  %v1224 = vsub.s32 5, %v1223
  %v1225 = vrot.slane %v263, %v1224
  %v1226 = vlaneseq
  %v1227 = vshrl.u32 %v1226, 7
  %v1228 = vsub.s32 5, %v1227
  %v1229 = vrot.slane %v264, %v1228
  %v1230 = vmul.f32 %v1212, %v1217
  %v1231 = vmul.f32 %v1211, %v1221
  %v1232 = vmul.f32 %v1210, %v1225
  %v1233 = vmul.f32 %v1213, %v1229
  %v1235 = vsel %vm337, %v257, 0
  %v1238 = vsel %vm195, %v1230, 0
  %v1241 = vsel %vm195, %v1231, 0
  %v1244 = vsel %vm195, %v1232, 0
  %v1247 = vsel %vm195, %v1233, 0
  %1249 = vmatprep.subr.mxu0 %v1241
  %1250 = vmatpush1.msra.mxu0 %v1238
  %1251 = vmatprep.subr.mxu0 0.0
  %1252 = vmatpush1.msra.mxu0 0.0
  %1253 = vmatprep.subr.mxu0 0.0
  %1254 = vmatpush1.msra.mxu0 0.0
  %1255 = vmatprep.subr.mxu0 0.0
  %1256 = vmatpush1.msra.mxu0 0.0
  %1257 = vmatprep.subr.mxu0 0.0
  %1258 = vmatpush1.msra.mxu0 0.0
  %1259 = vmatprep.subr.mxu0 0.0
  %1260 = vmatpush1.msra.mxu0 0.0
  %1261 = vmatprep.subr.mxu0 0.0
  %1262 = vmatpush1.msra.mxu0 0.0
  %1263 = vmatprep.subr.mxu0 0.0
  %1264 = vmatpush1.msra.mxu0 0.0
  %1265 = vmatprep.subr.mxu0 0.0
  %1266 = vmatpush1.msra.mxu0 0.0
  %1267 = vmatprep.subr.mxu0 0.0
  %1268 = vmatpush1.msra.mxu0 0.0
  %1269 = vmatprep.subr.mxu0 0.0
  %1270 = vmatpush1.msra.mxu0 0.0
  %1271 = vmatprep.subr.mxu0 0.0
  %1272 = vmatpush1.msra.mxu0 0.0
  %1273 = vmatprep.subr.mxu0 0.0
  %1274 = vmatpush1.msra.mxu0 0.0
  %1275 = vmatprep.subr.mxu0 0.0
  %1276 = vmatpush1.msra.mxu0 0.0
  %1277 = vmatprep.subr.mxu0 0.0
  %1278 = vmatpush1.msra.mxu0 0.0
  %1279 = vmatprep.subr.mxu0 0.0
  %1280 = vmatpush1.msra.mxu0 0.0
  %1281 = vmatprep.subr.mxu0 0.0
  %1282 = vmatpush1.msra.mxu0 0.0
  %1283 = vmatprep.subr.mxu0 0.0
  %1284 = vmatpush1.msra.mxu0 0.0
  %1285 = vmatprep.subr.mxu0 0.0
  %1286 = vmatpush1.msra.mxu0 0.0
  %1287 = vmatprep.subr.mxu0 0.0
  %1288 = vmatpush1.msra.mxu0 0.0
  %1289 = vmatprep.subr.mxu0 0.0
  %1290 = vmatpush1.msra.mxu0 0.0
  %1291 = vmatprep.subr.mxu0 0.0
  %1292 = vmatpush1.msra.mxu0 0.0
  %1293 = vmatprep.subr.mxu0 0.0
  %1294 = vmatpush1.msra.mxu0 0.0
  %1295 = vmatprep.subr.mxu0 0.0
  %1296 = vmatpush1.msra.mxu0 0.0
  %1297 = vmatprep.subr.mxu0 0.0
  %1298 = vmatpush1.msra.mxu0 0.0
  %1299 = vmatprep.subr.mxu0 0.0
  %1300 = vmatpush1.msra.mxu0 0.0
  %1301 = vmatprep.subr.mxu0 0.0
  %1302 = vmatpush1.msra.mxu0 0.0
  %1303 = vmatprep.subr.mxu0 0.0
  %1304 = vmatpush1.msra.mxu0 0.0
  %1305 = vmatprep.subr.mxu0 0.0
  %1306 = vmatpush1.msra.mxu0 0.0
  %1307 = vmatprep.subr.mxu0 0.0
  %1308 = vmatpush1.msra.mxu0 0.0
  %1309 = vmatprep.subr.mxu0 0.0
  %1310 = vmatpush1.msra.mxu0 0.0
  %1311 = vmatprep.subr.mxu0 0.0
  %1312 = vmatpush1.msra.mxu0 0.0
  %1313 = vmatprep.mubr.f32.mxu0 0.0
  %1314 = vmatmul.mubr.f32.gmra.mrb[0].mxu0 %v1235
  %v1315 = vpop.f32.mrb[0].mxu0
  %v1316 = vadd.f32 0.0, %v1315
  %v1317 = vpop.f32.mrb[0].mxu0
  %v1318 = vadd.f32 0.0, %v1317
  %1319 = vdwg.mxu0
  %1320 = vmatprep.subr.mxu0 %v1247
  %1321 = vmatpush1.msra.mxu0 %v1244
  %1322 = vmatprep.subr.mxu0 0.0
  %1323 = vmatpush1.msra.mxu0 0.0
  %1324 = vmatprep.subr.mxu0 0.0
  %1325 = vmatpush1.msra.mxu0 0.0
  %1326 = vmatprep.subr.mxu0 0.0
  %1327 = vmatpush1.msra.mxu0 0.0
  %1328 = vmatprep.subr.mxu0 0.0
  %1329 = vmatpush1.msra.mxu0 0.0
  %1330 = vmatprep.subr.mxu0 0.0
  %1331 = vmatpush1.msra.mxu0 0.0
  %1332 = vmatprep.subr.mxu0 0.0
  %1333 = vmatpush1.msra.mxu0 0.0
  %1334 = vmatprep.subr.mxu0 0.0
  %1335 = vmatpush1.msra.mxu0 0.0
  %1336 = vmatprep.subr.mxu0 0.0
  %1337 = vmatpush1.msra.mxu0 0.0
  %1338 = vmatprep.subr.mxu0 0.0
  %1339 = vmatpush1.msra.mxu0 0.0
  %1340 = vmatprep.subr.mxu0 0.0
  %1341 = vmatpush1.msra.mxu0 0.0
  %1342 = vmatprep.subr.mxu0 0.0
  %1343 = vmatpush1.msra.mxu0 0.0
  %1344 = vmatprep.subr.mxu0 0.0
  %1345 = vmatpush1.msra.mxu0 0.0
  %1346 = vmatprep.subr.mxu0 0.0
  %1347 = vmatpush1.msra.mxu0 0.0
  %1348 = vmatprep.subr.mxu0 0.0
  %1349 = vmatpush1.msra.mxu0 0.0
  %1350 = vmatprep.subr.mxu0 0.0
  %1351 = vmatpush1.msra.mxu0 0.0
  %1352 = vmatprep.subr.mxu0 0.0
  %1353 = vmatpush1.msra.mxu0 0.0
  %1354 = vmatprep.subr.mxu0 0.0
  %1355 = vmatpush1.msra.mxu0 0.0
  %1356 = vmatprep.subr.mxu0 0.0
  %1357 = vmatpush1.msra.mxu0 0.0
  %1358 = vmatprep.subr.mxu0 0.0
  %1359 = vmatpush1.msra.mxu0 0.0
  %1360 = vmatprep.subr.mxu0 0.0
  %1361 = vmatpush1.msra.mxu0 0.0
  %1362 = vmatprep.subr.mxu0 0.0
  %1363 = vmatpush1.msra.mxu0 0.0
  %1364 = vmatprep.subr.mxu0 0.0
  %1365 = vmatpush1.msra.mxu0 0.0
  %1366 = vmatprep.subr.mxu0 0.0
  %1367 = vmatpush1.msra.mxu0 0.0
  %1368 = vmatprep.subr.mxu0 0.0
  %1369 = vmatpush1.msra.mxu0 0.0
  %1370 = vmatprep.subr.mxu0 0.0
  %1371 = vmatpush1.msra.mxu0 0.0
  %1372 = vmatprep.subr.mxu0 0.0
  %1373 = vmatpush1.msra.mxu0 0.0
  %1374 = vmatprep.subr.mxu0 0.0
  %1375 = vmatpush1.msra.mxu0 0.0
  %1376 = vmatprep.subr.mxu0 0.0
  %1377 = vmatpush1.msra.mxu0 0.0
  %1378 = vmatprep.subr.mxu0 0.0
  %1379 = vmatpush1.msra.mxu0 0.0
  %1380 = vmatprep.subr.mxu0 0.0
  %1381 = vmatpush1.msra.mxu0 0.0
  %1382 = vmatprep.subr.mxu0 0.0
  %1383 = vmatpush1.msra.mxu0 0.0
  %1384 = vmatprep.mubr.f32.mxu0 0.0
  %1385 = vmatmul.mubr.f32.gmra.mrb[0].mxu0 %v1235
  %v1386 = vpop.f32.mrb[0].mxu0
  %v1387 = vadd.f32 0.0, %v1386
  %v1388 = vpop.f32.mrb[0].mxu0
  %v1389 = vadd.f32 0.0, %v1388
  %1390 = vdwg.mxu0
  %v1391 = vadd.f32 %v1197, %v1316
  %v1392 = vadd.f32 %v1198, %v1318
  %v1393 = vadd.f32 %v1199, %v1387
  %v1394 = vadd.f32 %v1200, %v1389
  %1395 = vrot.lane.b32.xlu0 %v248, 113
  %v1396 = vpop.permute.xlu0 %1395
  %1397 = vrot.lane.b32.xlu0 %v249, 113
  %v1398 = vpop.permute.xlu0 %1397
  %1399 = vrot.lane.b32.xlu0 %v250, 113
  %v1400 = vpop.permute.xlu0 %1399
  %1401 = vrot.lane.b32.xlu0 %v251, 113
  %v1402 = vpop.permute.xlu0 %1401
  %vm1403 = vcmp.lt.s32.totalorder %v278, 113
  %v1404 = vsel %vm1403, %v1400, %v1402
  %v1405 = vsel %vm1403, %v1398, %v1400
  %v1406 = vsel %vm1403, %v1396, %v1398
  %v1407 = vsel %vm1403, %v1402, %v1396
  %v1408 = vlaneseq
  %v1409 = vshrl.u32 %v1408, 7
  %v1410 = vsub.s32 6, %v1409
  %v1411 = vrot.slane %v261, %v1410
  %v1412 = vlaneseq
  %v1413 = vshrl.u32 %v1412, 7
  %v1414 = vsub.s32 6, %v1413
  %v1415 = vrot.slane %v262, %v1414
  %v1416 = vlaneseq
  %v1417 = vshrl.u32 %v1416, 7
  %v1418 = vsub.s32 6, %v1417
  %v1419 = vrot.slane %v263, %v1418
  %v1420 = vlaneseq
  %v1421 = vshrl.u32 %v1420, 7
  %v1422 = vsub.s32 6, %v1421
  %v1423 = vrot.slane %v264, %v1422
  %v1424 = vmul.f32 %v1406, %v1411
  %v1425 = vmul.f32 %v1405, %v1415
  %v1426 = vmul.f32 %v1404, %v1419
  %v1427 = vmul.f32 %v1407, %v1423
  %v1429 = vsel %vm337, %v258, 0
  %v1432 = vsel %vm195, %v1424, 0
  %v1435 = vsel %vm195, %v1425, 0
  %v1438 = vsel %vm195, %v1426, 0
  %v1441 = vsel %vm195, %v1427, 0
  %1443 = vmatprep.subr.mxu0 %v1435
  %1444 = vmatpush1.msra.mxu0 %v1432
  %1445 = vmatprep.subr.mxu0 0.0
  %1446 = vmatpush1.msra.mxu0 0.0
  %1447 = vmatprep.subr.mxu0 0.0
  %1448 = vmatpush1.msra.mxu0 0.0
  %1449 = vmatprep.subr.mxu0 0.0
  %1450 = vmatpush1.msra.mxu0 0.0
  %1451 = vmatprep.subr.mxu0 0.0
  %1452 = vmatpush1.msra.mxu0 0.0
  %1453 = vmatprep.subr.mxu0 0.0
  %1454 = vmatpush1.msra.mxu0 0.0
  %1455 = vmatprep.subr.mxu0 0.0
  %1456 = vmatpush1.msra.mxu0 0.0
  %1457 = vmatprep.subr.mxu0 0.0
  %1458 = vmatpush1.msra.mxu0 0.0
  %1459 = vmatprep.subr.mxu0 0.0
  %1460 = vmatpush1.msra.mxu0 0.0
  %1461 = vmatprep.subr.mxu0 0.0
  %1462 = vmatpush1.msra.mxu0 0.0
  %1463 = vmatprep.subr.mxu0 0.0
  %1464 = vmatpush1.msra.mxu0 0.0
  %1465 = vmatprep.subr.mxu0 0.0
  %1466 = vmatpush1.msra.mxu0 0.0
  %1467 = vmatprep.subr.mxu0 0.0
  %1468 = vmatpush1.msra.mxu0 0.0
  %1469 = vmatprep.subr.mxu0 0.0
  %1470 = vmatpush1.msra.mxu0 0.0
  %1471 = vmatprep.subr.mxu0 0.0
  %1472 = vmatpush1.msra.mxu0 0.0
  %1473 = vmatprep.subr.mxu0 0.0
  %1474 = vmatpush1.msra.mxu0 0.0
  %1475 = vmatprep.subr.mxu0 0.0
  %1476 = vmatpush1.msra.mxu0 0.0
  %1477 = vmatprep.subr.mxu0 0.0
  %1478 = vmatpush1.msra.mxu0 0.0
  %1479 = vmatprep.subr.mxu0 0.0
  %1480 = vmatpush1.msra.mxu0 0.0
  %1481 = vmatprep.subr.mxu0 0.0
  %1482 = vmatpush1.msra.mxu0 0.0
  %1483 = vmatprep.subr.mxu0 0.0
  %1484 = vmatpush1.msra.mxu0 0.0
  %1485 = vmatprep.subr.mxu0 0.0
  %1486 = vmatpush1.msra.mxu0 0.0
  %1487 = vmatprep.subr.mxu0 0.0
  %1488 = vmatpush1.msra.mxu0 0.0
  %1489 = vmatprep.subr.mxu0 0.0
  %1490 = vmatpush1.msra.mxu0 0.0
  %1491 = vmatprep.subr.mxu0 0.0
  %1492 = vmatpush1.msra.mxu0 0.0
  %1493 = vmatprep.subr.mxu0 0.0
  %1494 = vmatpush1.msra.mxu0 0.0
  %1495 = vmatprep.subr.mxu0 0.0
  %1496 = vmatpush1.msra.mxu0 0.0
  %1497 = vmatprep.subr.mxu0 0.0
  %1498 = vmatpush1.msra.mxu0 0.0
  %1499 = vmatprep.subr.mxu0 0.0
  %1500 = vmatpush1.msra.mxu0 0.0
  %1501 = vmatprep.subr.mxu0 0.0
  %1502 = vmatpush1.msra.mxu0 0.0
  %1503 = vmatprep.subr.mxu0 0.0
  %1504 = vmatpush1.msra.mxu0 0.0
  %1505 = vmatprep.subr.mxu0 0.0
  %1506 = vmatpush1.msra.mxu0 0.0
  %1507 = vmatprep.mubr.f32.mxu0 0.0
  %1508 = vmatmul.mubr.f32.gmra.mrb[0].mxu0 %v1429
  %v1509 = vpop.f32.mrb[0].mxu0
  %v1510 = vadd.f32 0.0, %v1509
  %v1511 = vpop.f32.mrb[0].mxu0
  %v1512 = vadd.f32 0.0, %v1511
  %1513 = vdwg.mxu0
  %1514 = vmatprep.subr.mxu0 %v1441
  %1515 = vmatpush1.msra.mxu0 %v1438
  %1516 = vmatprep.subr.mxu0 0.0
  %1517 = vmatpush1.msra.mxu0 0.0
  %1518 = vmatprep.subr.mxu0 0.0
  %1519 = vmatpush1.msra.mxu0 0.0
  %1520 = vmatprep.subr.mxu0 0.0
  %1521 = vmatpush1.msra.mxu0 0.0
  %1522 = vmatprep.subr.mxu0 0.0
  %1523 = vmatpush1.msra.mxu0 0.0
  %1524 = vmatprep.subr.mxu0 0.0
  %1525 = vmatpush1.msra.mxu0 0.0
  %1526 = vmatprep.subr.mxu0 0.0
  %1527 = vmatpush1.msra.mxu0 0.0
  %1528 = vmatprep.subr.mxu0 0.0
  %1529 = vmatpush1.msra.mxu0 0.0
  %1530 = vmatprep.subr.mxu0 0.0
  %1531 = vmatpush1.msra.mxu0 0.0
  %1532 = vmatprep.subr.mxu0 0.0
  %1533 = vmatpush1.msra.mxu0 0.0
  %1534 = vmatprep.subr.mxu0 0.0
  %1535 = vmatpush1.msra.mxu0 0.0
  %1536 = vmatprep.subr.mxu0 0.0
  %1537 = vmatpush1.msra.mxu0 0.0
  %1538 = vmatprep.subr.mxu0 0.0
  %1539 = vmatpush1.msra.mxu0 0.0
  %1540 = vmatprep.subr.mxu0 0.0
  %1541 = vmatpush1.msra.mxu0 0.0
  %1542 = vmatprep.subr.mxu0 0.0
  %1543 = vmatpush1.msra.mxu0 0.0
  %1544 = vmatprep.subr.mxu0 0.0
  %1545 = vmatpush1.msra.mxu0 0.0
  %1546 = vmatprep.subr.mxu0 0.0
  %1547 = vmatpush1.msra.mxu0 0.0
  %1548 = vmatprep.subr.mxu0 0.0
  %1549 = vmatpush1.msra.mxu0 0.0
  %1550 = vmatprep.subr.mxu0 0.0
  %1551 = vmatpush1.msra.mxu0 0.0
  %1552 = vmatprep.subr.mxu0 0.0
  %1553 = vmatpush1.msra.mxu0 0.0
  %1554 = vmatprep.subr.mxu0 0.0
  %1555 = vmatpush1.msra.mxu0 0.0
  %1556 = vmatprep.subr.mxu0 0.0
  %1557 = vmatpush1.msra.mxu0 0.0
  %1558 = vmatprep.subr.mxu0 0.0
  %1559 = vmatpush1.msra.mxu0 0.0
  %1560 = vmatprep.subr.mxu0 0.0
  %1561 = vmatpush1.msra.mxu0 0.0
  %1562 = vmatprep.subr.mxu0 0.0
  %1563 = vmatpush1.msra.mxu0 0.0
  %1564 = vmatprep.subr.mxu0 0.0
  %1565 = vmatpush1.msra.mxu0 0.0
  %1566 = vmatprep.subr.mxu0 0.0
  %1567 = vmatpush1.msra.mxu0 0.0
  %1568 = vmatprep.subr.mxu0 0.0
  %1569 = vmatpush1.msra.mxu0 0.0
  %1570 = vmatprep.subr.mxu0 0.0
  %1571 = vmatpush1.msra.mxu0 0.0
  %1572 = vmatprep.subr.mxu0 0.0
  %1573 = vmatpush1.msra.mxu0 0.0
  %1574 = vmatprep.subr.mxu0 0.0
  %1575 = vmatpush1.msra.mxu0 0.0
  %1576 = vmatprep.subr.mxu0 0.0
  %1577 = vmatpush1.msra.mxu0 0.0
  %1578 = vmatprep.mubr.f32.mxu0 0.0
  %1579 = vmatmul.mubr.f32.gmra.mrb[0].mxu0 %v1429
  %v1580 = vpop.f32.mrb[0].mxu0
  %v1581 = vadd.f32 0.0, %v1580
  %v1582 = vpop.f32.mrb[0].mxu0
  %v1583 = vadd.f32 0.0, %v1582
  %1584 = vdwg.mxu0
  %v1585 = vadd.f32 %v1391, %v1510
  %v1586 = vadd.f32 %v1392, %v1512
  %v1587 = vadd.f32 %v1393, %v1581
  %v1588 = vadd.f32 %v1394, %v1583
  %1589 = vrot.lane.b32.xlu0 %v248, 112
  %v1590 = vpop.permute.xlu0 %1589
  %1591 = vrot.lane.b32.xlu0 %v249, 112
  %v1592 = vpop.permute.xlu0 %1591
  %1593 = vrot.lane.b32.xlu0 %v250, 112
  %v1594 = vpop.permute.xlu0 %1593
  %1595 = vrot.lane.b32.xlu0 %v251, 112
  %v1596 = vpop.permute.xlu0 %1595
  %vm1597 = vcmp.lt.s32.totalorder %v278, 112
  %v1598 = vsel %vm1597, %v1594, %v1596
  %v1599 = vsel %vm1597, %v1592, %v1594
  %v1600 = vsel %vm1597, %v1590, %v1592
  %v1601 = vsel %vm1597, %v1596, %v1590
  %v1602 = vlaneseq
  %v1603 = vshrl.u32 %v1602, 7
  %v1604 = vsub.s32 7, %v1603
  %v1605 = vrot.slane %v261, %v1604
  %v1606 = vlaneseq
  %v1607 = vshrl.u32 %v1606, 7
  %v1608 = vsub.s32 7, %v1607
  %v1609 = vrot.slane %v262, %v1608
  %v1610 = vlaneseq
  %v1611 = vshrl.u32 %v1610, 7
  %v1612 = vsub.s32 7, %v1611
  %v1613 = vrot.slane %v263, %v1612
  %v1614 = vlaneseq
  %v1615 = vshrl.u32 %v1614, 7
  %v1616 = vsub.s32 7, %v1615
  %v1617 = vrot.slane %v264, %v1616
  %v1618 = vmul.f32 %v1600, %v1605
  %v1619 = vmul.f32 %v1599, %v1609
  %v1620 = vmul.f32 %v1598, %v1613
  %v1621 = vmul.f32 %v1601, %v1617
  %v1623 = vsel %vm337, %v259, 0
  %v1626 = vsel %vm195, %v1618, 0
  %v1629 = vsel %vm195, %v1619, 0
  %v1632 = vsel %vm195, %v1620, 0
  %v1635 = vsel %vm195, %v1621, 0
  %1637 = vmatprep.subr.mxu0 %v1629
  %1638 = vmatpush1.msra.mxu0 %v1626
  %1639 = vmatprep.subr.mxu0 0.0
  %1640 = vmatpush1.msra.mxu0 0.0
  %1641 = vmatprep.subr.mxu0 0.0
  %1642 = vmatpush1.msra.mxu0 0.0
  %1643 = vmatprep.subr.mxu0 0.0
  %1644 = vmatpush1.msra.mxu0 0.0
  %1645 = vmatprep.subr.mxu0 0.0
  %1646 = vmatpush1.msra.mxu0 0.0
  %1647 = vmatprep.subr.mxu0 0.0
  %1648 = vmatpush1.msra.mxu0 0.0
  %1649 = vmatprep.subr.mxu0 0.0
  %1650 = vmatpush1.msra.mxu0 0.0
  %1651 = vmatprep.subr.mxu0 0.0
  %1652 = vmatpush1.msra.mxu0 0.0
  %1653 = vmatprep.subr.mxu0 0.0
  %1654 = vmatpush1.msra.mxu0 0.0
  %1655 = vmatprep.subr.mxu0 0.0
  %1656 = vmatpush1.msra.mxu0 0.0
  %1657 = vmatprep.subr.mxu0 0.0
  %1658 = vmatpush1.msra.mxu0 0.0
  %1659 = vmatprep.subr.mxu0 0.0
  %1660 = vmatpush1.msra.mxu0 0.0
  %1661 = vmatprep.subr.mxu0 0.0
  %1662 = vmatpush1.msra.mxu0 0.0
  %1663 = vmatprep.subr.mxu0 0.0
  %1664 = vmatpush1.msra.mxu0 0.0
  %1665 = vmatprep.subr.mxu0 0.0
  %1666 = vmatpush1.msra.mxu0 0.0
  %1667 = vmatprep.subr.mxu0 0.0
  %1668 = vmatpush1.msra.mxu0 0.0
  %1669 = vmatprep.subr.mxu0 0.0
  %1670 = vmatpush1.msra.mxu0 0.0
  %1671 = vmatprep.subr.mxu0 0.0
  %1672 = vmatpush1.msra.mxu0 0.0
  %1673 = vmatprep.subr.mxu0 0.0
  %1674 = vmatpush1.msra.mxu0 0.0
  %1675 = vmatprep.subr.mxu0 0.0
  %1676 = vmatpush1.msra.mxu0 0.0
  %1677 = vmatprep.subr.mxu0 0.0
  %1678 = vmatpush1.msra.mxu0 0.0
  %1679 = vmatprep.subr.mxu0 0.0
  %1680 = vmatpush1.msra.mxu0 0.0
  %1681 = vmatprep.subr.mxu0 0.0
  %1682 = vmatpush1.msra.mxu0 0.0
  %1683 = vmatprep.subr.mxu0 0.0
  %1684 = vmatpush1.msra.mxu0 0.0
  %1685 = vmatprep.subr.mxu0 0.0
  %1686 = vmatpush1.msra.mxu0 0.0
  %1687 = vmatprep.subr.mxu0 0.0
  %1688 = vmatpush1.msra.mxu0 0.0
  %1689 = vmatprep.subr.mxu0 0.0
  %1690 = vmatpush1.msra.mxu0 0.0
  %1691 = vmatprep.subr.mxu0 0.0
  %1692 = vmatpush1.msra.mxu0 0.0
  %1693 = vmatprep.subr.mxu0 0.0
  %1694 = vmatpush1.msra.mxu0 0.0
  %1695 = vmatprep.subr.mxu0 0.0
  %1696 = vmatpush1.msra.mxu0 0.0
  %1697 = vmatprep.subr.mxu0 0.0
  %1698 = vmatpush1.msra.mxu0 0.0
  %1699 = vmatprep.subr.mxu0 0.0
  %1700 = vmatpush1.msra.mxu0 0.0
  %1701 = vmatprep.mubr.f32.mxu0 0.0
  %1702 = vmatmul.mubr.f32.gmra.mrb[0].mxu0 %v1623
  %v1703 = vpop.f32.mrb[0].mxu0
  %v1704 = vadd.f32 0.0, %v1703
  %v1705 = vpop.f32.mrb[0].mxu0
  %v1706 = vadd.f32 0.0, %v1705
  %1707 = vdwg.mxu0
  %1708 = vmatprep.subr.mxu0 %v1635
  %1709 = vmatpush1.msra.mxu0 %v1632
  %1710 = vmatprep.subr.mxu0 0.0
  %1711 = vmatpush1.msra.mxu0 0.0
  %1712 = vmatprep.subr.mxu0 0.0
  %1713 = vmatpush1.msra.mxu0 0.0
  %1714 = vmatprep.subr.mxu0 0.0
  %1715 = vmatpush1.msra.mxu0 0.0
  %1716 = vmatprep.subr.mxu0 0.0
  %1717 = vmatpush1.msra.mxu0 0.0
  %1718 = vmatprep.subr.mxu0 0.0
  %1719 = vmatpush1.msra.mxu0 0.0
  %1720 = vmatprep.subr.mxu0 0.0
  %1721 = vmatpush1.msra.mxu0 0.0
  %1722 = vmatprep.subr.mxu0 0.0
  %1723 = vmatpush1.msra.mxu0 0.0
  %1724 = vmatprep.subr.mxu0 0.0
  %1725 = vmatpush1.msra.mxu0 0.0
  %1726 = vmatprep.subr.mxu0 0.0
  %1727 = vmatpush1.msra.mxu0 0.0
  %1728 = vmatprep.subr.mxu0 0.0
  %1729 = vmatpush1.msra.mxu0 0.0
  %1730 = vmatprep.subr.mxu0 0.0
  %1731 = vmatpush1.msra.mxu0 0.0
  %1732 = vmatprep.subr.mxu0 0.0
  %1733 = vmatpush1.msra.mxu0 0.0
  %1734 = vmatprep.subr.mxu0 0.0
  %1735 = vmatpush1.msra.mxu0 0.0
  %1736 = vmatprep.subr.mxu0 0.0
  %1737 = vmatpush1.msra.mxu0 0.0
  %1738 = vmatprep.subr.mxu0 0.0
  %1739 = vmatpush1.msra.mxu0 0.0
  %1740 = vmatprep.subr.mxu0 0.0
  %1741 = vmatpush1.msra.mxu0 0.0
  %1742 = vmatprep.subr.mxu0 0.0
  %1743 = vmatpush1.msra.mxu0 0.0
  %1744 = vmatprep.subr.mxu0 0.0
  %1745 = vmatpush1.msra.mxu0 0.0
  %1746 = vmatprep.subr.mxu0 0.0
  %1747 = vmatpush1.msra.mxu0 0.0
  %1748 = vmatprep.subr.mxu0 0.0
  %1749 = vmatpush1.msra.mxu0 0.0
  %1750 = vmatprep.subr.mxu0 0.0
  %1751 = vmatpush1.msra.mxu0 0.0
  %1752 = vmatprep.subr.mxu0 0.0
  %1753 = vmatpush1.msra.mxu0 0.0
  %1754 = vmatprep.subr.mxu0 0.0
  %1755 = vmatpush1.msra.mxu0 0.0
  %1756 = vmatprep.subr.mxu0 0.0
  %1757 = vmatpush1.msra.mxu0 0.0
  %1758 = vmatprep.subr.mxu0 0.0
  %1759 = vmatpush1.msra.mxu0 0.0
  %1760 = vmatprep.subr.mxu0 0.0
  %1761 = vmatpush1.msra.mxu0 0.0
  %1762 = vmatprep.subr.mxu0 0.0
  %1763 = vmatpush1.msra.mxu0 0.0
  %1764 = vmatprep.subr.mxu0 0.0
  %1765 = vmatpush1.msra.mxu0 0.0
  %1766 = vmatprep.subr.mxu0 0.0
  %1767 = vmatpush1.msra.mxu0 0.0
  %1768 = vmatprep.subr.mxu0 0.0
  %1769 = vmatpush1.msra.mxu0 0.0
  %1770 = vmatprep.subr.mxu0 0.0
  %1771 = vmatpush1.msra.mxu0 0.0
  %1772 = vmatprep.mubr.f32.mxu0 0.0
  %1773 = vmatmul.mubr.f32.gmra.mrb[0].mxu0 %v1623
  %v1774 = vpop.f32.mrb[0].mxu0
  %v1775 = vadd.f32 0.0, %v1774
  %v1776 = vpop.f32.mrb[0].mxu0
  %v1777 = vadd.f32 0.0, %v1776
  %1778 = vdwg.mxu0
  %v1779 = vadd.f32 %v1585, %v1704
  %v1780 = vadd.f32 %v1586, %v1706
  %v1781 = vadd.f32 %v1587, %v1775
  %v1782 = vadd.f32 %v1588, %v1777
  %1783 = vrot.lane.b32.xlu0 %v248, 111
  %v1784 = vpop.permute.xlu0 %1783
  %1785 = vrot.lane.b32.xlu0 %v249, 111
  %v1786 = vpop.permute.xlu0 %1785
  %1787 = vrot.lane.b32.xlu0 %v250, 111
  %v1788 = vpop.permute.xlu0 %1787
  %1789 = vrot.lane.b32.xlu0 %v251, 111
  %v1790 = vpop.permute.xlu0 %1789
  %vm1791 = vcmp.lt.s32.totalorder %v278, 111
  %v1792 = vsel %vm1791, %v1788, %v1790
  %v1793 = vsel %vm1791, %v1786, %v1788
  %v1794 = vsel %vm1791, %v1784, %v1786
  %v1795 = vsel %vm1791, %v1790, %v1784
  %v1796 = vlaneseq
  %v1797 = vshrl.u32 %v1796, 7
  %v1798 = vsub.s32 0, %v1797
  %v1799 = vrot.slane %v265, %v1798
  %v1800 = vlaneseq
  %v1801 = vshrl.u32 %v1800, 7
  %v1802 = vsub.s32 0, %v1801
  %v1803 = vrot.slane %v266, %v1802
  %v1804 = vlaneseq
  %v1805 = vshrl.u32 %v1804, 7
  %v1806 = vsub.s32 0, %v1805
  %v1807 = vrot.slane %v267, %v1806
  %v1808 = vlaneseq
  %v1809 = vshrl.u32 %v1808, 7
  %v1810 = vsub.s32 0, %v1809
  %v1811 = vrot.slane %v268, %v1810
  %v1812 = vmul.f32 %v1794, %v1799
  %v1813 = vmul.f32 %v1793, %v1803
  %v1814 = vmul.f32 %v1792, %v1807
  %v1815 = vmul.f32 %v1795, %v1811
  %v1817 = vsel %vm337, %v260, 0
  %v1820 = vsel %vm195, %v1812, 0
  %v1823 = vsel %vm195, %v1813, 0
  %v1826 = vsel %vm195, %v1814, 0
  %v1829 = vsel %vm195, %v1815, 0
  %1831 = vmatprep.subr.mxu0 %v1823
  %1832 = vmatpush1.msra.mxu0 %v1820
  %1833 = vmatprep.subr.mxu0 0.0
  %1834 = vmatpush1.msra.mxu0 0.0
  %1835 = vmatprep.subr.mxu0 0.0
  %1836 = vmatpush1.msra.mxu0 0.0
  %1837 = vmatprep.subr.mxu0 0.0
  %1838 = vmatpush1.msra.mxu0 0.0
  %1839 = vmatprep.subr.mxu0 0.0
  %1840 = vmatpush1.msra.mxu0 0.0
  %1841 = vmatprep.subr.mxu0 0.0
  %1842 = vmatpush1.msra.mxu0 0.0
  %1843 = vmatprep.subr.mxu0 0.0
  %1844 = vmatpush1.msra.mxu0 0.0
  %1845 = vmatprep.subr.mxu0 0.0
  %1846 = vmatpush1.msra.mxu0 0.0
  %1847 = vmatprep.subr.mxu0 0.0
  %1848 = vmatpush1.msra.mxu0 0.0
  %1849 = vmatprep.subr.mxu0 0.0
  %1850 = vmatpush1.msra.mxu0 0.0
  %1851 = vmatprep.subr.mxu0 0.0
  %1852 = vmatpush1.msra.mxu0 0.0
  %1853 = vmatprep.subr.mxu0 0.0
  %1854 = vmatpush1.msra.mxu0 0.0
  %1855 = vmatprep.subr.mxu0 0.0
  %1856 = vmatpush1.msra.mxu0 0.0
  %1857 = vmatprep.subr.mxu0 0.0
  %1858 = vmatpush1.msra.mxu0 0.0
  %1859 = vmatprep.subr.mxu0 0.0
  %1860 = vmatpush1.msra.mxu0 0.0
  %1861 = vmatprep.subr.mxu0 0.0
  %1862 = vmatpush1.msra.mxu0 0.0
  %1863 = vmatprep.subr.mxu0 0.0
  %1864 = vmatpush1.msra.mxu0 0.0
  %1865 = vmatprep.subr.mxu0 0.0
  %1866 = vmatpush1.msra.mxu0 0.0
  %1867 = vmatprep.subr.mxu0 0.0
  %1868 = vmatpush1.msra.mxu0 0.0
  %1869 = vmatprep.subr.mxu0 0.0
  %1870 = vmatpush1.msra.mxu0 0.0
  %1871 = vmatprep.subr.mxu0 0.0
  %1872 = vmatpush1.msra.mxu0 0.0
  %1873 = vmatprep.subr.mxu0 0.0
  %1874 = vmatpush1.msra.mxu0 0.0
  %1875 = vmatprep.subr.mxu0 0.0
  %1876 = vmatpush1.msra.mxu0 0.0
  %1877 = vmatprep.subr.mxu0 0.0
  %1878 = vmatpush1.msra.mxu0 0.0
  %1879 = vmatprep.subr.mxu0 0.0
  %1880 = vmatpush1.msra.mxu0 0.0
  %1881 = vmatprep.subr.mxu0 0.0
  %1882 = vmatpush1.msra.mxu0 0.0
  %1883 = vmatprep.subr.mxu0 0.0
  %1884 = vmatpush1.msra.mxu0 0.0
  %1885 = vmatprep.subr.mxu0 0.0
  %1886 = vmatpush1.msra.mxu0 0.0
  %1887 = vmatprep.subr.mxu0 0.0
  %1888 = vmatpush1.msra.mxu0 0.0
  %1889 = vmatprep.subr.mxu0 0.0
  %1890 = vmatpush1.msra.mxu0 0.0
  %1891 = vmatprep.subr.mxu0 0.0
  %1892 = vmatpush1.msra.mxu0 0.0
  %1893 = vmatprep.subr.mxu0 0.0
  %1894 = vmatpush1.msra.mxu0 0.0
  %1895 = vmatprep.mubr.f32.mxu0 0.0
  %1896 = vmatmul.mubr.f32.gmra.mrb[0].mxu0 %v1817
  %v1897 = vpop.f32.mrb[0].mxu0
  %v1898 = vadd.f32 0.0, %v1897
  %v1899 = vpop.f32.mrb[0].mxu0
  %v1900 = vadd.f32 0.0, %v1899
  %1901 = vdwg.mxu0
  %1902 = vmatprep.subr.mxu0 %v1829
  %1903 = vmatpush1.msra.mxu0 %v1826
  %1904 = vmatprep.subr.mxu0 0.0
  %1905 = vmatpush1.msra.mxu0 0.0
  %1906 = vmatprep.subr.mxu0 0.0
  %1907 = vmatpush1.msra.mxu0 0.0
  %1908 = vmatprep.subr.mxu0 0.0
  %1909 = vmatpush1.msra.mxu0 0.0
  %1910 = vmatprep.subr.mxu0 0.0
  %1911 = vmatpush1.msra.mxu0 0.0
  %1912 = vmatprep.subr.mxu0 0.0
  %1913 = vmatpush1.msra.mxu0 0.0
  %1914 = vmatprep.subr.mxu0 0.0
  %1915 = vmatpush1.msra.mxu0 0.0
  %1916 = vmatprep.subr.mxu0 0.0
  %1917 = vmatpush1.msra.mxu0 0.0
  %1918 = vmatprep.subr.mxu0 0.0
  %1919 = vmatpush1.msra.mxu0 0.0
  %1920 = vmatprep.subr.mxu0 0.0
  %1921 = vmatpush1.msra.mxu0 0.0
  %1922 = vmatprep.subr.mxu0 0.0
  %1923 = vmatpush1.msra.mxu0 0.0
  %1924 = vmatprep.subr.mxu0 0.0
  %1925 = vmatpush1.msra.mxu0 0.0
  %1926 = vmatprep.subr.mxu0 0.0
  %1927 = vmatpush1.msra.mxu0 0.0
  %1928 = vmatprep.subr.mxu0 0.0
  %1929 = vmatpush1.msra.mxu0 0.0
  %1930 = vmatprep.subr.mxu0 0.0
  %1931 = vmatpush1.msra.mxu0 0.0
  %1932 = vmatprep.subr.mxu0 0.0
  %1933 = vmatpush1.msra.mxu0 0.0
  %1934 = vmatprep.subr.mxu0 0.0
  %1935 = vmatpush1.msra.mxu0 0.0
  %1936 = vmatprep.subr.mxu0 0.0
  %1937 = vmatpush1.msra.mxu0 0.0
  %1938 = vmatprep.subr.mxu0 0.0
  %1939 = vmatpush1.msra.mxu0 0.0
  %1940 = vmatprep.subr.mxu0 0.0
  %1941 = vmatpush1.msra.mxu0 0.0
  %1942 = vmatprep.subr.mxu0 0.0
  %1943 = vmatpush1.msra.mxu0 0.0
  %1944 = vmatprep.subr.mxu0 0.0
  %1945 = vmatpush1.msra.mxu0 0.0
  %1946 = vmatprep.subr.mxu0 0.0
  %1947 = vmatpush1.msra.mxu0 0.0
  %1948 = vmatprep.subr.mxu0 0.0
  %1949 = vmatpush1.msra.mxu0 0.0
  %1950 = vmatprep.subr.mxu0 0.0
  %1951 = vmatpush1.msra.mxu0 0.0
  %1952 = vmatprep.subr.mxu0 0.0
  %1953 = vmatpush1.msra.mxu0 0.0
  %1954 = vmatprep.subr.mxu0 0.0
  %1955 = vmatpush1.msra.mxu0 0.0
  %1956 = vmatprep.subr.mxu0 0.0
  %1957 = vmatpush1.msra.mxu0 0.0
  %1958 = vmatprep.subr.mxu0 0.0
  %1959 = vmatpush1.msra.mxu0 0.0
  %1960 = vmatprep.subr.mxu0 0.0
  %1961 = vmatpush1.msra.mxu0 0.0
  %1962 = vmatprep.subr.mxu0 0.0
  %1963 = vmatpush1.msra.mxu0 0.0
  %1964 = vmatprep.subr.mxu0 0.0
  %1965 = vmatpush1.msra.mxu0 0.0
  %1966 = vmatprep.mubr.f32.mxu0 0.0
  %1967 = vmatmul.mubr.f32.gmra.mrb[0].mxu0 %v1817
  %v1968 = vpop.f32.mrb[0].mxu0
  %v1969 = vadd.f32 0.0, %v1968
  %v1970 = vpop.f32.mrb[0].mxu0
  %v1971 = vadd.f32 0.0, %v1970
  %1972 = vdwg.mxu0
  %v1973 = vadd.f32 %v1779, %v1898
  %v1974 = vadd.f32 %v1780, %v1900
  %v1975 = vadd.f32 %v1781, %v1969
  %v1976 = vadd.f32 %v1782, %v1971
  %v1977 = vld [vmem:[%s6] sm:$0xf]
  %v1978 = vld [vmem:[%s7] sm:$0xf]
  %v1979 = vsel %vm195, %v1973, 0.0
  %v1980 = vsel %vm195, %v1974, 0.0
  %v1981 = vadd.f32 %v1979, %v1980
  %v1982 = vsel %vm195, %v1975, 0.0
  %v1983 = vadd.f32 %v1981, %v1982
  %v1984 = vsel %vm195, %v1976, 0.0
  %v1985 = vadd.f32 %v1983, %v1984
  %1986 = vadd.xlane.f32.xlu0 %v1985
  %v1987 = vpop.xlane.xlu0 %1986
  %v1988 = vmul.f32 %v1987, %v205
  %v1989 = vsub.f32 %v1973, %v1988
  %v1990 = vsub.f32 %v1974, %v1988
  %v1991 = vsub.f32 %v1975, %v1988
  %v1992 = vsub.f32 %v1976, %v1988
  %v1993 = vmul.f32 %v1989, %v1989
  %v1994 = vmul.f32 %v1990, %v1990
  %v1995 = vmul.f32 %v1991, %v1991
  %v1996 = vmul.f32 %v1992, %v1992
  %v1997 = vsel %vm195, %v1993, 0.0
  %v1998 = vsel %vm195, %v1994, 0.0
  %v1999 = vadd.f32 %v1997, %v1998
  %v2000 = vsel %vm195, %v1995, 0.0
  %v2001 = vadd.f32 %v1999, %v2000
  %v2002 = vsel %vm195, %v1996, 0.0
  %v2003 = vadd.f32 %v2001, %v2002
  %2004 = vadd.xlane.f32.xlu0 %v2003
  %v2005 = vpop.xlane.xlu0 %2004
  %v2006 = vmul.f32 %v2005, %v205
  %v2007 = vadd.f32 %v2006, 1e-05
  %v2008 = vrsqrt.pop %v2007
  %v2009 = vmul.f32 %v1977, %v2008
  %v2010 = vmul.f32 %v1988, %v2009
  %v2011 = vsub.f32 %v1978, %v2010
  %2013 = vset.pattern.permute.xlu0 0
  %2014 = vperm.xlu0 %2013, %v2009
  %v2015 = vpop.permute.xlu0 %2014
  %v2017 = vmul.f32 %v1973, %v2015
  %v2018 = vmul.f32 %v1974, %v2015
  %v2019 = vmul.f32 %v1975, %v2015
  %v2020 = vmul.f32 %v1976, %v2015
  %2022 = vset.pattern.permute.xlu0 0
  %2023 = vperm.xlu0 %2022, %v2011
  %v2024 = vpop.permute.xlu0 %2023
  %v2026 = vadd.f32 %v2017, %v2024
  %v2027 = vadd.f32 %v2018, %v2024
  %v2028 = vadd.f32 %v2019, %v2024
  %v2029 = vadd.f32 %v2020, %v2024
  %v2030 = vmax.f32 %v2026, 0.0
  %v2031 = vmax.f32 %v2027, 0.0
  %v2032 = vmax.f32 %v2028, 0.0
  %v2033 = vmax.f32 %v2029, 0.0
  %v2034 = vld [vmem:[%s3] sm:$0xff]
  %v2035 = vld [vmem:[%s3 + $0x8] sm:$0xff]
  %v2037 = vsel %vm337, %v2034, 0
  %v2040 = vsel %vm337, %v2035, 0
  %v2043 = vsel %vm195, %v2030, 0
  %v2046 = vsel %vm195, %v2031, 0
  %v2049 = vsel %vm195, %v2032, 0
  %v2052 = vsel %vm195, %v2033, 0
  %2054 = vmatprep.subr.mxu0 %v2046
  %2055 = vmatpush1.msra.mxu0 %v2043
  %2056 = vmatprep.subr.mxu0 0.0
  %2057 = vmatpush1.msra.mxu0 0.0
  %2058 = vmatprep.subr.mxu0 0.0
  %2059 = vmatpush1.msra.mxu0 0.0
  %2060 = vmatprep.subr.mxu0 0.0
  %2061 = vmatpush1.msra.mxu0 0.0
  %2062 = vmatprep.subr.mxu0 0.0
  %2063 = vmatpush1.msra.mxu0 0.0
  %2064 = vmatprep.subr.mxu0 0.0
  %2065 = vmatpush1.msra.mxu0 0.0
  %2066 = vmatprep.subr.mxu0 0.0
  %2067 = vmatpush1.msra.mxu0 0.0
  %2068 = vmatprep.subr.mxu0 0.0
  %2069 = vmatpush1.msra.mxu0 0.0
  %2070 = vmatprep.subr.mxu0 0.0
  %2071 = vmatpush1.msra.mxu0 0.0
  %2072 = vmatprep.subr.mxu0 0.0
  %2073 = vmatpush1.msra.mxu0 0.0
  %2074 = vmatprep.subr.mxu0 0.0
  %2075 = vmatpush1.msra.mxu0 0.0
  %2076 = vmatprep.subr.mxu0 0.0
  %2077 = vmatpush1.msra.mxu0 0.0
  %2078 = vmatprep.subr.mxu0 0.0
  %2079 = vmatpush1.msra.mxu0 0.0
  %2080 = vmatprep.subr.mxu0 0.0
  %2081 = vmatpush1.msra.mxu0 0.0
  %2082 = vmatprep.subr.mxu0 0.0
  %2083 = vmatpush1.msra.mxu0 0.0
  %2084 = vmatprep.subr.mxu0 0.0
  %2085 = vmatpush1.msra.mxu0 0.0
  %2086 = vmatprep.subr.mxu0 0.0
  %2087 = vmatpush1.msra.mxu0 0.0
  %2088 = vmatprep.subr.mxu0 0.0
  %2089 = vmatpush1.msra.mxu0 0.0
  %2090 = vmatprep.subr.mxu0 0.0
  %2091 = vmatpush1.msra.mxu0 0.0
  %2092 = vmatprep.subr.mxu0 0.0
  %2093 = vmatpush1.msra.mxu0 0.0
  %2094 = vmatprep.subr.mxu0 0.0
  %2095 = vmatpush1.msra.mxu0 0.0
  %2096 = vmatprep.subr.mxu0 0.0
  %2097 = vmatpush1.msra.mxu0 0.0
  %2098 = vmatprep.subr.mxu0 0.0
  %2099 = vmatpush1.msra.mxu0 0.0
  %2100 = vmatprep.subr.mxu0 0.0
  %2101 = vmatpush1.msra.mxu0 0.0
  %2102 = vmatprep.subr.mxu0 0.0
  %2103 = vmatpush1.msra.mxu0 0.0
  %2104 = vmatprep.subr.mxu0 0.0
  %2105 = vmatpush1.msra.mxu0 0.0
  %2106 = vmatprep.subr.mxu0 0.0
  %2107 = vmatpush1.msra.mxu0 0.0
  %2108 = vmatprep.subr.mxu0 0.0
  %2109 = vmatpush1.msra.mxu0 0.0
  %2110 = vmatprep.subr.mxu0 0.0
  %2111 = vmatpush1.msra.mxu0 0.0
  %2112 = vmatprep.subr.mxu0 0.0
  %2113 = vmatpush1.msra.mxu0 0.0
  %2114 = vmatprep.subr.mxu0 0.0
  %2115 = vmatpush1.msra.mxu0 0.0
  %2116 = vmatprep.subr.mxu0 0.0
  %2117 = vmatpush1.msra.mxu0 0.0
  %2118 = vmatprep.mubr.f32.mxu0 0.0
  %2119 = vmatmul.mubr.f32.gmra.mrb[0].mxu0 %v2037
  %v2120 = vpop.f32.mrb[0].mxu0
  %v2121 = vadd.f32 0.0, %v2120
  %v2122 = vpop.f32.mrb[0].mxu0
  %v2123 = vadd.f32 0.0, %v2122
  %2124 = vmatprep.mubr.f32.mxu0 0.0
  %2125 = vmatmul.mubr.f32.gmra.mrb[0].mxu0 %v2040
  %v2126 = vpop.f32.mrb[0].mxu0
  %v2127 = vadd.f32 0.0, %v2126
  %v2128 = vpop.f32.mrb[0].mxu0
  %v2129 = vadd.f32 0.0, %v2128
  %2130 = vdwg.mxu0
  %2131 = vmatprep.subr.mxu0 %v2052
  %2132 = vmatpush1.msra.mxu0 %v2049
  %2133 = vmatprep.subr.mxu0 0.0
  %2134 = vmatpush1.msra.mxu0 0.0
  %2135 = vmatprep.subr.mxu0 0.0
  %2136 = vmatpush1.msra.mxu0 0.0
  %2137 = vmatprep.subr.mxu0 0.0
  %2138 = vmatpush1.msra.mxu0 0.0
  %2139 = vmatprep.subr.mxu0 0.0
  %2140 = vmatpush1.msra.mxu0 0.0
  %2141 = vmatprep.subr.mxu0 0.0
  %2142 = vmatpush1.msra.mxu0 0.0
  %2143 = vmatprep.subr.mxu0 0.0
  %2144 = vmatpush1.msra.mxu0 0.0
  %2145 = vmatprep.subr.mxu0 0.0
  %2146 = vmatpush1.msra.mxu0 0.0
  %2147 = vmatprep.subr.mxu0 0.0
  %2148 = vmatpush1.msra.mxu0 0.0
  %2149 = vmatprep.subr.mxu0 0.0
  %2150 = vmatpush1.msra.mxu0 0.0
  %2151 = vmatprep.subr.mxu0 0.0
  %2152 = vmatpush1.msra.mxu0 0.0
  %2153 = vmatprep.subr.mxu0 0.0
  %2154 = vmatpush1.msra.mxu0 0.0
  %2155 = vmatprep.subr.mxu0 0.0
  %2156 = vmatpush1.msra.mxu0 0.0
  %2157 = vmatprep.subr.mxu0 0.0
  %2158 = vmatpush1.msra.mxu0 0.0
  %2159 = vmatprep.subr.mxu0 0.0
  %2160 = vmatpush1.msra.mxu0 0.0
  %2161 = vmatprep.subr.mxu0 0.0
  %2162 = vmatpush1.msra.mxu0 0.0
  %2163 = vmatprep.subr.mxu0 0.0
  %2164 = vmatpush1.msra.mxu0 0.0
  %2165 = vmatprep.subr.mxu0 0.0
  %2166 = vmatpush1.msra.mxu0 0.0
  %2167 = vmatprep.subr.mxu0 0.0
  %2168 = vmatpush1.msra.mxu0 0.0
  %2169 = vmatprep.subr.mxu0 0.0
  %2170 = vmatpush1.msra.mxu0 0.0
  %2171 = vmatprep.subr.mxu0 0.0
  %2172 = vmatpush1.msra.mxu0 0.0
  %2173 = vmatprep.subr.mxu0 0.0
  %2174 = vmatpush1.msra.mxu0 0.0
  %2175 = vmatprep.subr.mxu0 0.0
  %2176 = vmatpush1.msra.mxu0 0.0
  %2177 = vmatprep.subr.mxu0 0.0
  %2178 = vmatpush1.msra.mxu0 0.0
  %2179 = vmatprep.subr.mxu0 0.0
  %2180 = vmatpush1.msra.mxu0 0.0
  %2181 = vmatprep.subr.mxu0 0.0
  %2182 = vmatpush1.msra.mxu0 0.0
  %2183 = vmatprep.subr.mxu0 0.0
  %2184 = vmatpush1.msra.mxu0 0.0
  %2185 = vmatprep.subr.mxu0 0.0
  %2186 = vmatpush1.msra.mxu0 0.0
  %2187 = vmatprep.subr.mxu0 0.0
  %2188 = vmatpush1.msra.mxu0 0.0
  %2189 = vmatprep.subr.mxu0 0.0
  %2190 = vmatpush1.msra.mxu0 0.0
  %2191 = vmatprep.subr.mxu0 0.0
  %2192 = vmatpush1.msra.mxu0 0.0
  %2193 = vmatprep.subr.mxu0 0.0
  %2194 = vmatpush1.msra.mxu0 0.0
  %2195 = vmatprep.mubr.f32.mxu0 0.0
  %2196 = vmatmul.mubr.f32.gmra.mrb[0].mxu0 %v2037
  %v2197 = vpop.f32.mrb[0].mxu0
  %v2198 = vadd.f32 0.0, %v2197
  %v2199 = vpop.f32.mrb[0].mxu0
  %v2200 = vadd.f32 0.0, %v2199
  %2201 = vmatprep.mubr.f32.mxu0 0.0
  %2202 = vmatmul.mubr.f32.gmra.mrb[0].mxu0 %v2040
  %v2203 = vpop.f32.mrb[0].mxu0
  %v2204 = vadd.f32 0.0, %v2203
  %v2205 = vpop.f32.mrb[0].mxu0
  %v2206 = vadd.f32 0.0, %v2205
  %2207 = vdwg.mxu0
  %v2208 = vld [vmem:[%s8] sm:$0xff]
  %v2209 = vld [vmem:[%s8 + $0x8] sm:$0xff]
  %v2210 = vld [vmem:[%s9] sm:$0xff]
  %v2211 = vld [vmem:[%s9 + $0x8] sm:$0xff]
  %v2212 = vadd.f32 %v2121, %v2123
  %v2213 = vadd.f32 %v2212, %v2198
  %v2214 = vadd.f32 %v2213, %v2200
  %2215 = vadd.xlane.f32.xlu0 %v2214
  %v2216 = vpop.xlane.xlu0 %2215
  %v2217 = vadd.f32 %v2127, %v2129
  %v2218 = vadd.f32 %v2217, %v2204
  %v2219 = vadd.f32 %v2218, %v2206
  %2220 = vadd.xlane.f32.xlu0 %v2219
  %v2221 = vpop.xlane.xlu0 %2220
  %v2222 = vmul.f32 %v2216, %v205
  %v2223 = vmul.f32 %v2221, %v205
  %v2224 = vsub.f32 %v2121, %v2222
  %v2225 = vsub.f32 %v2123, %v2222
  %v2226 = vsub.f32 %v2198, %v2222
  %v2227 = vsub.f32 %v2200, %v2222
  %v2228 = vsub.f32 %v2127, %v2223
  %v2229 = vsub.f32 %v2129, %v2223
  %v2230 = vsub.f32 %v2204, %v2223
  %v2231 = vsub.f32 %v2206, %v2223
  %v2232 = vmul.f32 %v2224, %v2224
  %v2233 = vmul.f32 %v2225, %v2225
  %v2234 = vmul.f32 %v2226, %v2226
  %v2235 = vmul.f32 %v2227, %v2227
  %v2236 = vmul.f32 %v2228, %v2228
  %v2237 = vmul.f32 %v2229, %v2229
  %v2238 = vmul.f32 %v2230, %v2230
  %v2239 = vmul.f32 %v2231, %v2231
  %v2240 = vadd.f32 %v2232, %v2233
  %v2241 = vadd.f32 %v2240, %v2234
  %v2242 = vadd.f32 %v2241, %v2235
  %2243 = vadd.xlane.f32.xlu0 %v2242
  %v2244 = vpop.xlane.xlu0 %2243
  %v2245 = vadd.f32 %v2236, %v2237
  %v2246 = vadd.f32 %v2245, %v2238
  %v2247 = vadd.f32 %v2246, %v2239
  %2248 = vadd.xlane.f32.xlu0 %v2247
  %v2249 = vpop.xlane.xlu0 %2248
  %v2250 = vmul.f32 %v2244, %v205
  %v2251 = vmul.f32 %v2249, %v205
  %v2252 = vadd.f32 %v2250, 1e-05
  %v2253 = vadd.f32 %v2251, 1e-05
  %v2254 = vrsqrt.pop %v2252
  %v2255 = vrsqrt.pop %v2253
  %v2256 = vmul.f32 %v2208, %v2254
  %v2257 = vmul.f32 %v2209, %v2255
  %v2258 = vmul.f32 %v2222, %v2256
  %v2259 = vmul.f32 %v2223, %v2257
  %v2260 = vsub.f32 %v2210, %v2258
  %v2261 = vsub.f32 %v2211, %v2259
  %2263 = vset.pattern.permute.xlu0 0
  %2264 = vperm.xlu0 %2263, %v2256
  %v2265 = vpop.permute.xlu0 %2264
  %2268 = vset.pattern.permute.xlu0 0
  %2269 = vperm.xlu0 %2268, %v2257
  %v2270 = vpop.permute.xlu0 %2269
  %v2272 = vmul.f32 %v2121, %v2265
  %v2273 = vmul.f32 %v2123, %v2265
  %v2274 = vmul.f32 %v2198, %v2265
  %v2275 = vmul.f32 %v2200, %v2265
  %v2276 = vmul.f32 %v2127, %v2270
  %v2277 = vmul.f32 %v2129, %v2270
  %v2278 = vmul.f32 %v2204, %v2270
  %v2279 = vmul.f32 %v2206, %v2270
  %2281 = vset.pattern.permute.xlu0 0
  %2282 = vperm.xlu0 %2281, %v2260
  %v2283 = vpop.permute.xlu0 %2282
  %2286 = vset.pattern.permute.xlu0 0
  %2287 = vperm.xlu0 %2286, %v2261
  %v2288 = vpop.permute.xlu0 %2287
  %v2290 = vadd.f32 %v2272, %v2283
  %v2291 = vadd.f32 %v2273, %v2283
  %v2292 = vadd.f32 %v2274, %v2283
  %v2293 = vadd.f32 %v2275, %v2283
  %v2294 = vadd.f32 %v2276, %v2288
  %v2295 = vadd.f32 %v2277, %v2288
  %v2296 = vadd.f32 %v2278, %v2288
  %v2297 = vadd.f32 %v2279, %v2288
  %v2298 = vadd.f32 %v2290, %v38
  %v2299 = vadd.f32 %v2291, %v39
  %v2300 = vadd.f32 %v2292, %v40
  %v2301 = vadd.f32 %v2293, %v41
  %v2302 = vadd.f32 %v2294, %v42
  %v2303 = vadd.f32 %v2295, %v43
  %v2304 = vadd.f32 %v2296, %v44
  %v2305 = vadd.f32 %v2297, %v45
  %v2306 = vmax.f32 %v2298, 0.0
  %v2307 = vmax.f32 %v2299, 0.0
  %v2308 = vmax.f32 %v2300, 0.0
  %v2309 = vmax.f32 %v2301, 0.0
  %v2310 = vmax.f32 %v2302, 0.0
  %v2311 = vmax.f32 %v2303, 0.0
  %v2312 = vmax.f32 %v2304, 0.0
  %v2313 = vmax.f32 %v2305, 0.0
  %2314 = vst [vmem:[%s11] sm:$0xff] %v2306
  %2315 = vst [vmem:[%s11 + $0x8] sm:$0xff] %v2307
  %2316 = vst [vmem:[%s11 + $0x10] sm:$0xff] %v2308
  %2317 = vst [vmem:[%s11 + $0x18] sm:$0xff] %v2309
  %2318 = vst [vmem:[%s11 + $0x20] sm:$0xff] %v2310
  %2319 = vst [vmem:[%s11 + $0x28] sm:$0xff] %v2311
  %2320 = vst [vmem:[%s11 + $0x30] sm:$0xff] %v2312
  %2321 = vst [vmem:[%s11 + $0x38] sm:$0xff] %v2313
  // Predicated region
  $region46: #{bottleneck_forward.1} parent=0 // pred_check
    _
  $region47: #{bottleneck_forward.1} parent=0 // pred_check_branch
    %2323 = sbr.rel (0) target = $region49
  $region48: #{bottleneck_forward.1} parent=0 // pred_region
    _
  $region49: #{bottleneck_forward.1} parent=0 // pred_fallthru
    _
  // Predicated region
  $region50: #{bottleneck_forward.1} parent=0 // pred_check
    _
  $region51: #{bottleneck_forward.1} parent=0 // pred_check_branch
    %2325 = sbr.rel (0) target = $region53
  $region52: #{bottleneck_forward.1} parent=0 // pred_region
    _
  $region53: #{bottleneck_forward.1} parent=0 // pred_fallthru
    _

</llo_original>
